<compile_context>
chip_gen: v6e
topology: v6e:2x2x1
jax: 0.10.0
libtpu: 0.0.40
codegen_flags: <defaults>
</compile_context>

<pallas_src>
import jax
import jax.numpy as jnp
from jax.experimental import pallas as pl
from jax.experimental.pallas import tpu as pltpu


def names_rnn_kernel(names_ref, len_ref, ew_ref, w_hh_ref, b_ref,
                     w_fc_ref, b_fc_ref, out_ref, x_scratch):
    # names_ref: (TB, S) int32     len_ref:  (TB, 1) int32
    # ew_ref:    (V, 4H)  = emb_table @ W_ih (gate-packed)
    # w_hh_ref:  (H, 4H)           b_ref:    (1, 4H)   (b_ih + b_hh combined)
    # w_fc_ref:  (H, O)            b_fc_ref: (1, O)
    # out_ref:   (TB, O)           x_scratch:(S, TB, 4H) f32 VMEM scratch
    tb, seq_len = names_ref.shape
    vocab = ew_ref.shape[0]
    H = w_hh_ref.shape[0]
    G = 4 * H

    ew = ew_ref[...]                                   # (V, 4H)
    w_hh = w_hh_ref[...]                               # (H, 4H)
    len_col = len_ref[...]                             # (TB, 1) int32
    # Hoisted broadcasts (JAX does not CSE broadcast_in_dim inside loops).
    bias_b = jnp.broadcast_to(b_ref[...], (tb, G)).astype(jnp.float32)
    lane_iota = jax.lax.broadcasted_iota(jnp.int32, (tb, vocab), 1)

    def mm(a, w):
        # Cast LHS to weight dtype (no-op for f32, bf16 drop-in), f32 MXU accum.
        return jnp.dot(a.astype(w.dtype), w, preferred_element_type=jnp.float32)

    # ---- Stage 1: per-step input contributions (independent of the recurrence).
    # One onehot @ (V, 4H) matmul per step, bias folded in; stored to scratch so
    # the recurrent loop's critical path carries only h @ W_hh + elementwise.
    for t in range(seq_len):
        ids_col = names_ref[:, t:t + 1]                          # (TB, 1)
        onehot = (lane_iota == ids_col).astype(ew.dtype)         # (TB, V)
        x_scratch[t] = mm(onehot, ew) + bias_b                   # (TB, 4H)

    # ---- Stage 2: LSTM recurrence with lane-dense packed gates.
    def step(t, carry):
        h, c, run_max = carry
        gates = x_scratch[t] + mm(h, w_hh)                       # (TB, 4H)
        gi = jax.nn.sigmoid(gates[:, 0 * H:1 * H])
        gf = jax.nn.sigmoid(gates[:, 1 * H:2 * H])
        gg = jnp.tanh(gates[:, 2 * H:3 * H])
        go = jax.nn.sigmoid(gates[:, 3 * H:4 * H])
        c = gf * c + gi * gg
        h = go * jnp.tanh(c)
        # pack/pad_packed semantics: outputs at t >= length are zero.
        masked = jnp.where(len_col > t, h, 0.0)                  # (TB, H)
        run_max = jnp.maximum(run_max, masked)
        return h, c, run_max

    h0 = jnp.zeros((tb, H), jnp.float32)
    c0 = jnp.zeros((tb, H), jnp.float32)
    rm0 = jnp.full((tb, H), -jnp.inf, jnp.float32)
    _, _, run_max = jax.lax.fori_loop(0, seq_len, step, (h0, c0, rm0))

    # tanh is monotone: max_t tanh(x_t) == tanh(max_t x_t); apply it once here,
    # followed by the module's second tanh on the pooled value.
    pooled = jnp.tanh(jnp.tanh(run_max))                         # (TB, H)
    logits = mm(pooled, w_fc_ref[...]) + b_fc_ref[...]           # (TB, O)

    # log_softmax along the feature dim (numerically stable).
    m = jnp.max(logits, axis=-1, keepdims=True)
    shifted = logits - m
    lse = jnp.log(jnp.sum(jnp.exp(shifted), axis=-1, keepdims=True))
    out_ref[...] = (shifted - lse).astype(out_ref.dtype)


def names_rnn_forward(names_sb, lengths, emb_table, w_ih, w_hh, b_gates,
                      w_fc, b_fc, *, batch_tile=None):
    """names_sb: (S, B) int32 token ids (time-major, like the PyTorch module).
       lengths:  (B,) int32 valid lengths (sorted descending for pack_padded fidelity).
       Weights are gate-packed: w_ih (E, 4H), w_hh (H, 4H), b_gates (1, 4H)."""
    S, B = names_sb.shape
    V, E = emb_table.shape
    H = w_hh.shape[0]
    O = w_fc.shape[-1]

    if batch_tile is None:
        # Large tiles fill the MXU M dim / amortize grid-step overhead for real
        # batches; 8 keeps >=2 grid tiles (both v7x TCs busy) at toy sizes.
        batch_tile = 128 if B >= 256 else 8

    # Fold the embedding through W_ih: onehot @ (emb @ W_ih) == (onehot @ emb) @ W_ih.
    ew = jnp.dot(emb_table.astype(w_ih.dtype), w_ih,
                 preferred_element_type=jnp.float32).astype(w_ih.dtype)   # (V, 4H)

    names_bm = names_sb.T.astype(jnp.int32)            # (B, S) batch-major for sublane tiling
    lengths_2d = lengths.astype(jnp.int32).reshape(B, 1)

    # Pad batch to a multiple of the tile (padded rows get length 0 -> ignored).
    Bp = pl.cdiv(B, batch_tile) * batch_tile
    if Bp != B:
        names_bm = jnp.pad(names_bm, ((0, Bp - B), (0, 0)))
        lengths_2d = jnp.pad(lengths_2d, ((0, Bp - B), (0, 0)))

    out = pl.pallas_call(
        names_rnn_kernel,
        out_shape=jax.ShapeDtypeStruct((Bp, O), jnp.float32),
        grid=(Bp // batch_tile,),
        in_specs=[
            pl.BlockSpec((batch_tile, S), lambda b: (b, 0)),     # names tile
            pl.BlockSpec((batch_tile, 1), lambda b: (b, 0)),     # lengths tile
            pl.BlockSpec((V, 4 * H), lambda b: (0, 0)),          # resident EW = emb @ W_ih
            pl.BlockSpec((H, 4 * H), lambda b: (0, 0)),          # resident W_hh (gate-packed)
            pl.BlockSpec((1, 4 * H), lambda b: (0, 0)),          # resident gate biases
            pl.BlockSpec((H, O), lambda b: (0, 0)),              # resident FC weight
            pl.BlockSpec((1, O), lambda b: (0, 0)),              # resident FC bias
        ],
        out_specs=pl.BlockSpec((batch_tile, O), lambda b: (b, 0)),
        scratch_shapes=[pltpu.VMEM((S, batch_tile, 4 * H), jnp.float32)],
        compiler_params=pltpu.CompilerParams(
            dimension_semantics=("parallel",)),                  # shard batch tiles across cores
    )(names_bm, lengths_2d, ew, w_hh, b_gates, w_fc, b_fc)
    return out[:B]


def reference_forward(names_sb, lengths, emb_table, w_ih, w_hh, b_gates, w_fc, b_fc):
    """Pure-JAX reference mirroring the PyTorch module (per-step tanh, unfused)."""
    S, B = names_sb.shape
    H = w_hh.shape[0]
    x = emb_table[names_sb]                       # (S, B, E)
    h = jnp.zeros((B, H), jnp.float32)
    c = jnp.zeros((B, H), jnp.float32)
    run_max = jnp.full((B, H), -jnp.inf, jnp.float32)
    for t in range(S):
        gates = x[t] @ w_ih + h @ w_hh + b_gates  # (B, 4H)
        gi = jax.nn.sigmoid(gates[:, 0 * H:1 * H])
        gf = jax.nn.sigmoid(gates[:, 1 * H:2 * H])
        gg = jnp.tanh(gates[:, 2 * H:3 * H])
        go = jax.nn.sigmoid(gates[:, 3 * H:4 * H])
        c = gf * c + gi * gg
        h = go * jnp.tanh(c)
        masked = jnp.where(lengths[:, None] > t, h, 0.0)
        run_max = jnp.maximum(run_max, jnp.tanh(masked))
    pooled = jnp.tanh(run_max)
    logits = pooled @ w_fc + b_fc
    return jax.nn.log_softmax(logits, axis=-1)


if __name__ == "__main__":
    # Small deterministic configuration consistent with the module.
    vocab_size = 32
    embedding_dim = 16
    hidden_dim = 32          # 4H = 128 -> lane-dense packed gates
    output_size = 16
    seq_len = 8
    batch = 16               # two batch tiles of 8 -> exercises the parallel grid

    key = jax.random.PRNGKey(0)
    (k_emb, k_ih, k_hh, k_b, k_fc, k_bfc, k_names, k_len) = jax.random.split(key, 8)

    bound = 1.0 / jnp.sqrt(hidden_dim)
    emb_table = jax.random.normal(k_emb, (vocab_size, embedding_dim), jnp.float32) * 0.5
    # Gate order i, f, g, o packed along the last axis; stored (in_features, 4H)
    # so the kernel computes x @ W.
    w_ih = jax.random.uniform(k_ih, (embedding_dim, 4 * hidden_dim), jnp.float32, -bound, bound)
    w_hh = jax.random.uniform(k_hh, (hidden_dim, 4 * hidden_dim), jnp.float32, -bound, bound)
    b_gates = jax.random.uniform(k_b, (1, 4 * hidden_dim), jnp.float32, -bound, bound)  # b_ih + b_hh
    w_fc = jax.random.uniform(k_fc, (hidden_dim, output_size), jnp.float32, -bound, bound)
    b_fc = jax.random.uniform(k_bfc, (1, output_size), jnp.float32, -bound, bound)

    names = jax.random.randint(k_names, (seq_len, batch), 0, vocab_size, jnp.int32)
    lengths = jax.random.randint(k_len, (batch,), 1, seq_len + 1, jnp.int32)
    lengths = jnp.sort(lengths)[::-1]            # pack_padded_sequence expects descending

    log_probs = names_rnn_forward(names, lengths, emb_table, w_ih, w_hh, b_gates, w_fc, b_fc)
    log_probs = jax.block_until_ready(log_probs)

    ref = reference_forward(names, lengths, emb_table, w_ih, w_hh, b_gates, w_fc, b_fc)

    assert log_probs.shape == (batch, output_size)
    assert jnp.allclose(log_probs, ref, atol=2e-3, rtol=2e-3)
    assert jnp.allclose(jnp.sum(jnp.exp(log_probs), axis=-1), 1.0, atol=1e-3)

    print("KERNEL_OK")
</pallas_src>

<mosaic_0001>
module attributes {stable_mosaic.version = 11 : i64} {
  func.func @names_rnn_kernel(%arg0: i32, %arg1: memref<8x8xi32, #tpu.memory_space<vmem>>, %arg2: memref<8x1xi32, #tpu.memory_space<vmem>>, %arg3: memref<32x128xf32, #tpu.memory_space<vmem>>, %arg4: memref<32x128xf32, #tpu.memory_space<vmem>>, %arg5: memref<1x128xf32, #tpu.memory_space<vmem>>, %arg6: memref<32x16xf32, #tpu.memory_space<vmem>>, %arg7: memref<1x16xf32, #tpu.memory_space<vmem>>, %arg8: memref<8x16xf32, #tpu.memory_space<vmem>>, %arg9: memref<8x8x128xf32, #tpu.memory_space<vmem>>) attributes {dimension_semantics = [#tpu.dimension_semantics<parallel>], iteration_bounds = array<i64: 2>, scalar_prefetch = 0 : i64, scratch_operands = 1 : i64, tpu.core_type = #tpu.core_type<tc>, window_params = [{transform_indices = @transform_0, window_bounds = array<i64: 8, 8>}, {transform_indices = @transform_1, window_bounds = array<i64: 8, 1>}, {pipeline_mode = #tpu.pipeline_mode<synchronous>, transform_indices = @transform_2, window_bounds = array<i64: 32, 128>}, {pipeline_mode = #tpu.pipeline_mode<synchronous>, transform_indices = @transform_3, window_bounds = array<i64: 32, 128>}, {pipeline_mode = #tpu.pipeline_mode<synchronous>, transform_indices = @transform_4, window_bounds = array<i64: 1, 128>}, {pipeline_mode = #tpu.pipeline_mode<synchronous>, transform_indices = @transform_5, window_bounds = array<i64: 32, 16>}, {pipeline_mode = #tpu.pipeline_mode<synchronous>, transform_indices = @transform_6, window_bounds = array<i64: 1, 16>}, {transform_indices = @transform_7, window_bounds = array<i64: 8, 16>}]} {
    %c0 = arith.constant 0 : index
    %c0_0 = arith.constant 0 : index
    %0 = vector.load %arg3[%c0, %c0_0] : memref<32x128xf32, #tpu.memory_space<vmem>>, vector<32x128xf32>
    %c0_1 = arith.constant 0 : index
    %c0_2 = arith.constant 0 : index
    %1 = vector.load %arg4[%c0_1, %c0_2] : memref<32x128xf32, #tpu.memory_space<vmem>>, vector<32x128xf32>
    %c0_3 = arith.constant 0 : index
    %c0_4 = arith.constant 0 : index
    %2 = vector.load %arg2[%c0_3, %c0_4] : memref<8x1xi32, #tpu.memory_space<vmem>>, vector<8x1xi32>
    %c0_5 = arith.constant 0 : index
    %c0_6 = arith.constant 0 : index
    %3 = vector.load %arg5[%c0_5, %c0_6] : memref<1x128xf32, #tpu.memory_space<vmem>>, vector<1x128xf32>
    %4 = vector.shape_cast %3 : vector<1x128xf32> to vector<1x128xf32>
    %5 = vector.broadcast %4 : vector<1x128xf32> to vector<8x128xf32>
    %6 = tpu.iota {dimensions = array<i32: 1>} : vector<8x32xi32>
    %c0_7 = arith.constant 0 : index
    %c0_8 = arith.constant 0 : index
    %7 = vector.load %arg1[%c0_7, %c0_8] : memref<8x8xi32, #tpu.memory_space<vmem>>, vector<8x1xi32>
    %8 = vector.broadcast %7 : vector<8x1xi32> to vector<8x32xi32>
    %9 = arith.cmpi eq, %6, %8 : vector<8x32xi32>
    %10 = arith.extui %9 : vector<8x32xi1> to vector<8x32xi32>
    %11 = arith.sitofp %10 : vector<8x32xi32> to vector<8x32xf32>
    %cst = arith.constant dense<0.000000e+00> : vector<8x128xf32>
    %12 = tpu.matmul %11, %0, %cst {dimension_numbers = #tpu.dot_dimension_numbers<[1], [0], [0], [1], [0, 0, 1, 1], [], []>} : vector<8x32xf32>, vector<32x128xf32>, vector<8x128xf32> -> vector<8x128xf32>
    %13 = arith.addf %12, %5 : vector<8x128xf32>
    %c0_9 = arith.constant 0 : index
    %c0_10 = arith.constant 0 : index
    %c0_11 = arith.constant 0 : index
    %14 = vector.load %arg9[%c0_9, %c0_10, %c0_11] : memref<8x8x128xf32, #tpu.memory_space<vmem>>, vector<1x8x128xf32>
    %15 = vector.shape_cast %14 : vector<1x8x128xf32> to vector<8x128xf32>
    %16 = vector.shape_cast %13 : vector<8x128xf32> to vector<1x8x128xf32>
    tpu.vector_store %arg9[%c0_9, %c0_10, %c0_11], %16 {strides = array<i32>} : memref<8x8x128xf32, #tpu.memory_space<vmem>>, vector<1x8x128xf32>,
    %c0_12 = arith.constant 0 : index
    %c1 = arith.constant 1 : index
    %17 = vector.load %arg1[%c0_12, %c1] : memref<8x8xi32, #tpu.memory_space<vmem>>, vector<8x1xi32>
    %18 = vector.broadcast %17 : vector<8x1xi32> to vector<8x32xi32>
    %19 = arith.cmpi eq, %6, %18 : vector<8x32xi32>
    %20 = arith.extui %19 : vector<8x32xi1> to vector<8x32xi32>
    %21 = arith.sitofp %20 : vector<8x32xi32> to vector<8x32xf32>
    %cst_13 = arith.constant dense<0.000000e+00> : vector<8x128xf32>
    %22 = tpu.matmul %21, %0, %cst_13 {dimension_numbers = #tpu.dot_dimension_numbers<[1], [0], [0], [1], [0, 0, 1, 1], [], []>} : vector<8x32xf32>, vector<32x128xf32>, vector<8x128xf32> -> vector<8x128xf32>
    %23 = arith.addf %22, %5 : vector<8x128xf32>
    %c1_14 = arith.constant 1 : index
    %c0_15 = arith.constant 0 : index
    %c0_16 = arith.constant 0 : index
    %24 = vector.load %arg9[%c1_14, %c0_15, %c0_16] : memref<8x8x128xf32, #tpu.memory_space<vmem>>, vector<1x8x128xf32>
    %25 = vector.shape_cast %24 : vector<1x8x128xf32> to vector<8x128xf32>
    %26 = vector.shape_cast %23 : vector<8x128xf32> to vector<1x8x128xf32>
    tpu.vector_store %arg9[%c1_14, %c0_15, %c0_16], %26 {strides = array<i32>} : memref<8x8x128xf32, #tpu.memory_space<vmem>>, vector<1x8x128xf32>,
    %c0_17 = arith.constant 0 : index
    %c2 = arith.constant 2 : index
    %27 = vector.load %arg1[%c0_17, %c2] : memref<8x8xi32, #tpu.memory_space<vmem>>, vector<8x1xi32>
    %28 = vector.broadcast %27 : vector<8x1xi32> to vector<8x32xi32>
    %29 = arith.cmpi eq, %6, %28 : vector<8x32xi32>
    %30 = arith.extui %29 : vector<8x32xi1> to vector<8x32xi32>
    %31 = arith.sitofp %30 : vector<8x32xi32> to vector<8x32xf32>
    %cst_18 = arith.constant dense<0.000000e+00> : vector<8x128xf32>
    %32 = tpu.matmul %31, %0, %cst_18 {dimension_numbers = #tpu.dot_dimension_numbers<[1], [0], [0], [1], [0, 0, 1, 1], [], []>} : vector<8x32xf32>, vector<32x128xf32>, vector<8x128xf32> -> vector<8x128xf32>
    %33 = arith.addf %32, %5 : vector<8x128xf32>
    %c2_19 = arith.constant 2 : index
    %c0_20 = arith.constant 0 : index
    %c0_21 = arith.constant 0 : index
    %34 = vector.load %arg9[%c2_19, %c0_20, %c0_21] : memref<8x8x128xf32, #tpu.memory_space<vmem>>, vector<1x8x128xf32>
    %35 = vector.shape_cast %34 : vector<1x8x128xf32> to vector<8x128xf32>
    %36 = vector.shape_cast %33 : vector<8x128xf32> to vector<1x8x128xf32>
    tpu.vector_store %arg9[%c2_19, %c0_20, %c0_21], %36 {strides = array<i32>} : memref<8x8x128xf32, #tpu.memory_space<vmem>>, vector<1x8x128xf32>,
    %c0_22 = arith.constant 0 : index
    %c3 = arith.constant 3 : index
    %37 = vector.load %arg1[%c0_22, %c3] : memref<8x8xi32, #tpu.memory_space<vmem>>, vector<8x1xi32>
    %38 = vector.broadcast %37 : vector<8x1xi32> to vector<8x32xi32>
    %39 = arith.cmpi eq, %6, %38 : vector<8x32xi32>
    %40 = arith.extui %39 : vector<8x32xi1> to vector<8x32xi32>
    %41 = arith.sitofp %40 : vector<8x32xi32> to vector<8x32xf32>
    %cst_23 = arith.constant dense<0.000000e+00> : vector<8x128xf32>
    %42 = tpu.matmul %41, %0, %cst_23 {dimension_numbers = #tpu.dot_dimension_numbers<[1], [0], [0], [1], [0, 0, 1, 1], [], []>} : vector<8x32xf32>, vector<32x128xf32>, vector<8x128xf32> -> vector<8x128xf32>
    %43 = arith.addf %42, %5 : vector<8x128xf32>
    %c3_24 = arith.constant 3 : index
    %c0_25 = arith.constant 0 : index
    %c0_26 = arith.constant 0 : index
    %44 = vector.load %arg9[%c3_24, %c0_25, %c0_26] : memref<8x8x128xf32, #tpu.memory_space<vmem>>, vector<1x8x128xf32>
    %45 = vector.shape_cast %44 : vector<1x8x128xf32> to vector<8x128xf32>
    %46 = vector.shape_cast %43 : vector<8x128xf32> to vector<1x8x128xf32>
    tpu.vector_store %arg9[%c3_24, %c0_25, %c0_26], %46 {strides = array<i32>} : memref<8x8x128xf32, #tpu.memory_space<vmem>>, vector<1x8x128xf32>,
    %c0_27 = arith.constant 0 : index
    %c4 = arith.constant 4 : index
    %47 = vector.load %arg1[%c0_27, %c4] : memref<8x8xi32, #tpu.memory_space<vmem>>, vector<8x1xi32>
    %48 = vector.broadcast %47 : vector<8x1xi32> to vector<8x32xi32>
    %49 = arith.cmpi eq, %6, %48 : vector<8x32xi32>
    %50 = arith.extui %49 : vector<8x32xi1> to vector<8x32xi32>
    %51 = arith.sitofp %50 : vector<8x32xi32> to vector<8x32xf32>
    %cst_28 = arith.constant dense<0.000000e+00> : vector<8x128xf32>
    %52 = tpu.matmul %51, %0, %cst_28 {dimension_numbers = #tpu.dot_dimension_numbers<[1], [0], [0], [1], [0, 0, 1, 1], [], []>} : vector<8x32xf32>, vector<32x128xf32>, vector<8x128xf32> -> vector<8x128xf32>
    %53 = arith.addf %52, %5 : vector<8x128xf32>
    %c4_29 = arith.constant 4 : index
    %c0_30 = arith.constant 0 : index
    %c0_31 = arith.constant 0 : index
    %54 = vector.load %arg9[%c4_29, %c0_30, %c0_31] : memref<8x8x128xf32, #tpu.memory_space<vmem>>, vector<1x8x128xf32>
    %55 = vector.shape_cast %54 : vector<1x8x128xf32> to vector<8x128xf32>
    %56 = vector.shape_cast %53 : vector<8x128xf32> to vector<1x8x128xf32>
    tpu.vector_store %arg9[%c4_29, %c0_30, %c0_31], %56 {strides = array<i32>} : memref<8x8x128xf32, #tpu.memory_space<vmem>>, vector<1x8x128xf32>,
    %c0_32 = arith.constant 0 : index
    %c5 = arith.constant 5 : index
    %57 = vector.load %arg1[%c0_32, %c5] : memref<8x8xi32, #tpu.memory_space<vmem>>, vector<8x1xi32>
    %58 = vector.broadcast %57 : vector<8x1xi32> to vector<8x32xi32>
    %59 = arith.cmpi eq, %6, %58 : vector<8x32xi32>
    %60 = arith.extui %59 : vector<8x32xi1> to vector<8x32xi32>
    %61 = arith.sitofp %60 : vector<8x32xi32> to vector<8x32xf32>
    %cst_33 = arith.constant dense<0.000000e+00> : vector<8x128xf32>
    %62 = tpu.matmul %61, %0, %cst_33 {dimension_numbers = #tpu.dot_dimension_numbers<[1], [0], [0], [1], [0, 0, 1, 1], [], []>} : vector<8x32xf32>, vector<32x128xf32>, vector<8x128xf32> -> vector<8x128xf32>
    %63 = arith.addf %62, %5 : vector<8x128xf32>
    %c5_34 = arith.constant 5 : index
    %c0_35 = arith.constant 0 : index
    %c0_36 = arith.constant 0 : index
    %64 = vector.load %arg9[%c5_34, %c0_35, %c0_36] : memref<8x8x128xf32, #tpu.memory_space<vmem>>, vector<1x8x128xf32>
    %65 = vector.shape_cast %64 : vector<1x8x128xf32> to vector<8x128xf32>
    %66 = vector.shape_cast %63 : vector<8x128xf32> to vector<1x8x128xf32>
    tpu.vector_store %arg9[%c5_34, %c0_35, %c0_36], %66 {strides = array<i32>} : memref<8x8x128xf32, #tpu.memory_space<vmem>>, vector<1x8x128xf32>,
    %c0_37 = arith.constant 0 : index
    %c6 = arith.constant 6 : index
    %67 = vector.load %arg1[%c0_37, %c6] : memref<8x8xi32, #tpu.memory_space<vmem>>, vector<8x1xi32>
    %68 = vector.broadcast %67 : vector<8x1xi32> to vector<8x32xi32>
    %69 = arith.cmpi eq, %6, %68 : vector<8x32xi32>
    %70 = arith.extui %69 : vector<8x32xi1> to vector<8x32xi32>
    %71 = arith.sitofp %70 : vector<8x32xi32> to vector<8x32xf32>
    %cst_38 = arith.constant dense<0.000000e+00> : vector<8x128xf32>
    %72 = tpu.matmul %71, %0, %cst_38 {dimension_numbers = #tpu.dot_dimension_numbers<[1], [0], [0], [1], [0, 0, 1, 1], [], []>} : vector<8x32xf32>, vector<32x128xf32>, vector<8x128xf32> -> vector<8x128xf32>
    %73 = arith.addf %72, %5 : vector<8x128xf32>
    %c6_39 = arith.constant 6 : index
    %c0_40 = arith.constant 0 : index
    %c0_41 = arith.constant 0 : index
    %74 = vector.load %arg9[%c6_39, %c0_40, %c0_41] : memref<8x8x128xf32, #tpu.memory_space<vmem>>, vector<1x8x128xf32>
    %75 = vector.shape_cast %74 : vector<1x8x128xf32> to vector<8x128xf32>
    %76 = vector.shape_cast %73 : vector<8x128xf32> to vector<1x8x128xf32>
    tpu.vector_store %arg9[%c6_39, %c0_40, %c0_41], %76 {strides = array<i32>} : memref<8x8x128xf32, #tpu.memory_space<vmem>>, vector<1x8x128xf32>,
    %c0_42 = arith.constant 0 : index
    %c7 = arith.constant 7 : index
    %77 = vector.load %arg1[%c0_42, %c7] : memref<8x8xi32, #tpu.memory_space<vmem>>, vector<8x1xi32>
    %78 = vector.broadcast %77 : vector<8x1xi32> to vector<8x32xi32>
    %79 = arith.cmpi eq, %6, %78 : vector<8x32xi32>
    %80 = arith.extui %79 : vector<8x32xi1> to vector<8x32xi32>
    %81 = arith.sitofp %80 : vector<8x32xi32> to vector<8x32xf32>
    %cst_43 = arith.constant dense<0.000000e+00> : vector<8x128xf32>
    %82 = tpu.matmul %81, %0, %cst_43 {dimension_numbers = #tpu.dot_dimension_numbers<[1], [0], [0], [1], [0, 0, 1, 1], [], []>} : vector<8x32xf32>, vector<32x128xf32>, vector<8x128xf32> -> vector<8x128xf32>
    %83 = arith.addf %82, %5 : vector<8x128xf32>
    %c7_44 = arith.constant 7 : index
    %c0_45 = arith.constant 0 : index
    %c0_46 = arith.constant 0 : index
    %84 = vector.load %arg9[%c7_44, %c0_45, %c0_46] : memref<8x8x128xf32, #tpu.memory_space<vmem>>, vector<1x8x128xf32>
    %85 = vector.shape_cast %84 : vector<1x8x128xf32> to vector<8x128xf32>
    %86 = vector.shape_cast %83 : vector<8x128xf32> to vector<1x8x128xf32>
    tpu.vector_store %arg9[%c7_44, %c0_45, %c0_46], %86 {strides = array<i32>} : memref<8x8x128xf32, #tpu.memory_space<vmem>>, vector<1x8x128xf32>,
    %cst_47 = arith.constant 0.000000e+00 : f32
    %87 = vector.broadcast %cst_47 : f32 to vector<8x32xf32>
    %cst_48 = arith.constant 0.000000e+00 : f32
    %88 = vector.broadcast %cst_48 : f32 to vector<8x32xf32>
    %cst_49 = arith.constant 0xFF800000 : f32
    %89 = vector.broadcast %cst_49 : f32 to vector<8x32xf32>
    %c0_i32 = arith.constant 0 : i32
    %c8_i32 = arith.constant 8 : i32
    %90 = arith.addi %c0_i32, %c8_i32 : i32
    %c1_i32 = arith.constant 1 : i32
    %91:3 = scf.for %arg10 = %c0_i32 to %90 step %c1_i32 iter_args(%arg11 = %87, %arg12 = %88, %arg13 = %89) -> (vector<8x32xf32>, vector<8x32xf32>, vector<8x32xf32>)  : i32 {
      %110 = arith.index_cast %arg10 : i32 to index
      %c0_60 = arith.constant 0 : index
      %c0_61 = arith.constant 0 : index
      %111 = vector.load %arg9[%110, %c0_60, %c0_61] : memref<8x8x128xf32, #tpu.memory_space<vmem>>, vector<1x8x128xf32>
      %112 = vector.shape_cast %111 : vector<1x8x128xf32> to vector<8x128xf32>
      %cst_62 = arith.constant dense<0.000000e+00> : vector<8x128xf32>
      %113 = tpu.matmul %arg11, %1, %cst_62 {dimension_numbers = #tpu.dot_dimension_numbers<[1], [0], [0], [1], [0, 0, 1, 1], [], []>} : vector<8x32xf32>, vector<32x128xf32>, vector<8x128xf32> -> vector<8x128xf32>
      %114 = arith.addf %112, %113 : vector<8x128xf32>
      %115 = vector.extract_strided_slice %114 {offsets = [0, 0], sizes = [8, 32], strides = [1, 1]} : vector<8x128xf32> to vector<8x32xf32>
      %116 = arith.negf %115 : vector<8x32xf32>
      %117 = math.exp %116 : vector<8x32xf32>
      %cst_63 = arith.constant 1.000000e+00 : f32
      %118 = vector.broadcast %cst_63 : f32 to vector<8x32xf32>
      %119 = arith.addf %118, %117 : vector<8x32xf32>
      %120 = arith.divf %118, %119 : vector<8x32xf32>
      %121 = vector.extract_strided_slice %114 {offsets = [0, 32], sizes = [8, 32], strides = [1, 1]} : vector<8x128xf32> to vector<8x32xf32>
      %122 = arith.negf %121 : vector<8x32xf32>
      %123 = math.exp %122 : vector<8x32xf32>
      %cst_64 = arith.constant 1.000000e+00 : f32
      %124 = vector.broadcast %cst_64 : f32 to vector<8x32xf32>
      %125 = arith.addf %124, %123 : vector<8x32xf32>
      %126 = arith.divf %124, %125 : vector<8x32xf32>
      %127 = vector.extract_strided_slice %114 {offsets = [0, 64], sizes = [8, 32], strides = [1, 1]} : vector<8x128xf32> to vector<8x32xf32>
      %128 = math.tanh %127 : vector<8x32xf32>
      %129 = vector.extract_strided_slice %114 {offsets = [0, 96], sizes = [8, 32], strides = [1, 1]} : vector<8x128xf32> to vector<8x32xf32>
      %130 = arith.negf %129 : vector<8x32xf32>
      %131 = math.exp %130 : vector<8x32xf32>
      %cst_65 = arith.constant 1.000000e+00 : f32
      %132 = vector.broadcast %cst_65 : f32 to vector<8x32xf32>
      %133 = arith.addf %132, %131 : vector<8x32xf32>
      %134 = arith.divf %132, %133 : vector<8x32xf32>
      %135 = arith.mulf %126, %arg12 : vector<8x32xf32>
      %136 = arith.mulf %120, %128 : vector<8x32xf32>
      %137 = arith.addf %135, %136 : vector<8x32xf32>
      %138 = math.tanh %137 : vector<8x32xf32>
      %139 = arith.mulf %134, %138 : vector<8x32xf32>
      %140 = vector.broadcast %arg10 : i32 to vector<8x1xi32>
      %141 = arith.cmpi sgt, %2, %140 : vector<8x1xi32>
      %cst_66 = arith.constant 0.000000e+00 : f32
      %142 = vector.shape_cast %141 : vector<8x1xi1> to vector<8x1xi1>
      %143 = vector.broadcast %142 : vector<8x1xi1> to vector<8x32xi1>
      %144 = vector.broadcast %cst_66 : f32 to vector<8x32xf32>
      %145 = arith.select %143, %139, %144 : vector<8x32xi1>, vector<8x32xf32>
      %146 = arith.maximumf %arg13, %145 : vector<8x32xf32>
      scf.yield %139, %137, %146 : vector<8x32xf32>, vector<8x32xf32>, vector<8x32xf32>
    }
    %c8_i32_50 = arith.constant 8 : i32
    %92 = math.tanh %91#2 : vector<8x32xf32>
    %93 = math.tanh %92 : vector<8x32xf32>
    %c0_51 = arith.constant 0 : index
    %c0_52 = arith.constant 0 : index
    %94 = vector.load %arg6[%c0_51, %c0_52] : memref<32x16xf32, #tpu.memory_space<vmem>>, vector<32x16xf32>
    %cst_53 = arith.constant dense<0.000000e+00> : vector<8x16xf32>
    %95 = tpu.matmul %93, %94, %cst_53 {dimension_numbers = #tpu.dot_dimension_numbers<[1], [0], [0], [1], [0, 0, 1, 1], [], []>} : vector<8x32xf32>, vector<32x16xf32>, vector<8x16xf32> -> vector<8x16xf32>
    %c0_54 = arith.constant 0 : index
    %c0_55 = arith.constant 0 : index
    %96 = vector.load %arg7[%c0_54, %c0_55] : memref<1x16xf32, #tpu.memory_space<vmem>>, vector<1x16xf32>
    %97 = vector.broadcast %96 : vector<1x16xf32> to vector<8x16xf32>
    %98 = arith.addf %95, %97 : vector<8x16xf32>
    %cst_56 = arith.constant dense<0xFF800000> : vector<8xf32>
    %99 = vector.multi_reduction <maximumf>, %98, %cst_56 [1] : vector<8x16xf32> to vector<8xf32>
    %100 = vector.shape_cast %99 : vector<8xf32> to vector<8x1xf32>
    %101 = vector.broadcast %100 : vector<8x1xf32> to vector<8x16xf32>
    %102 = arith.subf %98, %101 : vector<8x16xf32>
    %103 = math.exp %102 : vector<8x16xf32>
    %cst_57 = arith.constant dense<0.000000e+00> : vector<8xf32>
    %104 = vector.multi_reduction <add>, %103, %cst_57 [1] : vector<8x16xf32> to vector<8xf32>
    %105 = vector.shape_cast %104 : vector<8xf32> to vector<8x1xf32>
    %106 = math.log %105 : vector<8x1xf32>
    %107 = vector.broadcast %106 : vector<8x1xf32> to vector<8x16xf32>
    %108 = arith.subf %102, %107 : vector<8x16xf32>
    %c0_58 = arith.constant 0 : index
    %c0_59 = arith.constant 0 : index
    %109 = vector.load %arg8[%c0_58, %c0_59] : memref<8x16xf32, #tpu.memory_space<vmem>>, vector<8x16xf32>
    tpu.vector_store %arg8[%c0_58, %c0_59], %108 {strides = array<i32>} : memref<8x16xf32, #tpu.memory_space<vmem>>, vector<8x16xf32>,
    return
  }
  func.func @transform_0(%arg0: i32) -> (i32, i32) {
    %c0_i32 = arith.constant 0 : i32
    %c0_i32_0 = arith.constant 0 : i32
    return %arg0, %c0_i32 : i32, i32
  }
  func.func @transform_1(%arg0: i32) -> (i32, i32) {
    %c0_i32 = arith.constant 0 : i32
    %c0_i32_0 = arith.constant 0 : i32
    return %arg0, %c0_i32 : i32, i32
  }
  func.func @transform_2(%arg0: i32) -> (i32, i32) {
    %c0_i32 = arith.constant 0 : i32
    %c0_i32_0 = arith.constant 0 : i32
    %c0_i32_1 = arith.constant 0 : i32
    return %c0_i32, %c0_i32_0 : i32, i32
  }
  func.func @transform_3(%arg0: i32) -> (i32, i32) {
    %c0_i32 = arith.constant 0 : i32
    %c0_i32_0 = arith.constant 0 : i32
    %c0_i32_1 = arith.constant 0 : i32
    return %c0_i32, %c0_i32_0 : i32, i32
  }
  func.func @transform_4(%arg0: i32) -> (i32, i32) {
    %c0_i32 = arith.constant 0 : i32
    %c0_i32_0 = arith.constant 0 : i32
    %c0_i32_1 = arith.constant 0 : i32
    return %c0_i32, %c0_i32_0 : i32, i32
  }
  func.func @transform_5(%arg0: i32) -> (i32, i32) {
    %c0_i32 = arith.constant 0 : i32
    %c0_i32_0 = arith.constant 0 : i32
    %c0_i32_1 = arith.constant 0 : i32
    return %c0_i32, %c0_i32_0 : i32, i32
  }
  func.func @transform_6(%arg0: i32) -> (i32, i32) {
    %c0_i32 = arith.constant 0 : i32
    %c0_i32_0 = arith.constant 0 : i32
    %c0_i32_1 = arith.constant 0 : i32
    return %c0_i32, %c0_i32_0 : i32, i32
  }
  func.func @transform_7(%arg0: i32) -> (i32, i32) {
    %c0_i32 = arith.constant 0 : i32
    %c0_i32_0 = arith.constant 0 : i32
    return %arg0, %c0_i32 : i32, i32
  }
}

</mosaic_0001>

<llo_original>
// kernel: tpu_custom_call.1
$region0: #{tpu_custom_call.1}
  #allocation0 [shape = 'u32[]', space=smem, size = 0x4, offset = 0x4, fixed_abs, tag = 'smem constant byte address 0x4 - core index']
  #allocation1 [shape = 'u32[144,128]{1,0:T(1,128)}', space=vmem, size = 0x12000, scoped, tag = 'internal scratch']
  #allocation2 [shape = 'f32[8,8,128]{2,1,0:T(8,128)}', space=vmem, size = 0x8000, scoped, tag = 'scratch operand']
  %s0 = inlined_call_operand.vmem [shape: s32[16,8], index: 0, kind: input, shape index: {}]
  %s1 = inlined_call_operand.vmem [shape: s32[16,1], index: 1, kind: input, shape index: {}]
  %s2 = inlined_call_operand.vmem [shape: f32[32,128], index: 2, kind: input, shape index: {}]
  %s3 = inlined_call_operand.vmem [shape: f32[32,128], index: 3, kind: input, shape index: {}]
  %s4 = inlined_call_operand.vmem [shape: f32[1,128], index: 4, kind: input, shape index: {}]
  %s5 = inlined_call_operand.vmem [shape: f32[32,16], index: 5, kind: input, shape index: {}]
  %s6 = inlined_call_operand.vmem [shape: f32[1,16], index: 6, kind: input, shape index: {}]
  %s7 = inlined_call_operand.hbm [shape: f32[16,16], index: 7, kind: output, shape index: {}]
  %s8 = sld [smem:[#allocation0]]
  $region68: #{tpu_custom_call.1} parent=0
    _
  %s10 = ssub.s32 1, %s8
  %s11 = scalar_select 0, %s10, %s8
  $region1: #{tpu_custom_call.1} parent=0
    #allocation3 [shape = 'u8[8192]{0}', space=vmem, size = 0x2000, scoped, tag = 'output window, operand 0']
    #allocation4 [shape = 's32[2]{0}', space=sflag, size = 0x8, scoped, tag = 'scoped memory for tpu_custom_call.1']
    %12 = vsyncpa [#allocation4], 0
    %s13 = scalar_lea.sflag [#allocation4], 1
    %14 = vsyncpa %s13, 0
    loop: start=0, step=1, limit=4
    $region2: #{tpu_custom_call.1} parent=1 // loop_pre_header
      _
    $region3: #{tpu_custom_call.1} parent=1 // loop_header
      %s16 = sphi 0, %s20
      %p17 = scmp.ge.s32.totalorder %s16, 4
      %s26 = sphi 0, %s28
      %s29 = sphi 0, %s26
      %s30 = sphi 0, %s29
      %s46 = sphi 0, %s30
      %s52 = sphi 0, %s54
      %s55 = sphi 0, %s52
      %s56 = sphi 0, %s55
      %s72 = sphi 0, %s56
      %s76 = sphi 0, %s76
      %s78 = sphi 0, %s76
      %s79 = sphi 0, %s78
      %s93 = sphi 0, %s79
      %s97 = sphi 0, %s97
      %s99 = sphi 0, %s97
      %s100 = sphi 0, %s99
      %s114 = sphi 0, %s100
      %s118 = sphi 0, %s118
      %s120 = sphi 0, %s118
      %s121 = sphi 0, %s120
      %s135 = sphi 0, %s121
      %s139 = sphi 0, %s139
      %s141 = sphi 0, %s139
      %s142 = sphi 0, %s141
      %s156 = sphi 0, %s142
      %s160 = sphi 0, %s160
      %s162 = sphi 0, %s160
      %s163 = sphi 0, %s162
      %s177 = sphi 0, %s163
      %s183 = sphi 0, %s185
      %s186 = sphi 0, %s183
      %s187 = sphi 0, %s186
      %s203 = sphi 0, %s187
    $region4: #{tpu_custom_call.1} parent=1 // loop_header_branch
      %19 = sbr.rel (%p17) target = $region8
    $region5: #{tpu_custom_call.1} parent=1 // loop_body
      %s21 = ssub.s32 %s16, 1
      %s22 = ssub.s32 %s16, 2
      %s23 = sadd.s32 %s16, 1
      %s24 = ssub.s32 %s16, %s23
      %p25 = scmp.eq.s32.totalorder %s24, 0
      %s27 = sadd.s32 %s26, 1
      %s28 = scalar_select %p25, %s26, %s27
      %p31 = pneg %p25
      %p32 = scmp.eq.s32.totalorder %s16, 1
      %p33 = por %p31, %p32
      %p34 = scmp.ne.s32.totalorder %s26, %s29
      %p35 = scmp.eq.s32.totalorder %s16, 0
      %p36 = por %p34, %p35
      %p37 = scmp.ne.s32.totalorder %s26, %s29
      %p38 = scmp.eq.s32.totalorder %s21, 1
      %p39 = por %p37, %p38
      %p40 = scmp.ne.s32.totalorder %s29, %s30
      %p41 = scmp.eq.s32.totalorder %s21, 0
      %p42 = por %p40, %p41
      %p43 = scmp.ne.s32.totalorder %s29, %s30
      %p44 = scmp.eq.s32.totalorder %s22, 1
      %p45 = por %p43, %p44
      %p47 = scmp.ne.s32.totalorder %s30, %s46
      %p48 = scmp.eq.s32.totalorder %s22, 0
      %p49 = por %p47, %p48
      %s50 = ssub.s32 %s16, %s23
      %p51 = scmp.eq.s32.totalorder %s50, 0
      %s53 = sadd.s32 %s52, 1
      %s54 = scalar_select %p51, %s52, %s53
      %p57 = pneg %p51
      %p58 = scmp.eq.s32.totalorder %s16, 1
      %p59 = por %p57, %p58
      %p60 = scmp.ne.s32.totalorder %s52, %s55
      %p61 = scmp.eq.s32.totalorder %s16, 0
      %p62 = por %p60, %p61
      %p63 = scmp.ne.s32.totalorder %s52, %s55
      %p64 = scmp.eq.s32.totalorder %s21, 1
      %p65 = por %p63, %p64
      %p66 = scmp.ne.s32.totalorder %s55, %s56
      %p67 = scmp.eq.s32.totalorder %s21, 0
      %p68 = por %p66, %p67
      %p69 = scmp.ne.s32.totalorder %s55, %s56
      %p70 = scmp.eq.s32.totalorder %s22, 1
      %p71 = por %p69, %p70
      %p73 = scmp.ne.s32.totalorder %s56, %s72
      %p74 = scmp.eq.s32.totalorder %s22, 0
      %p75 = por %p73, %p74
      %s77 = sadd.s32 %s76, 1
      %p80 = scmp.eq.s32.totalorder %s16, 1
      %p81 = scmp.ne.s32.totalorder %s76, %s78
      %p82 = scmp.eq.s32.totalorder %s16, 0
      %p83 = por %p81, %p82
      %p84 = scmp.ne.s32.totalorder %s76, %s78
      %p85 = scmp.eq.s32.totalorder %s21, 1
      %p86 = por %p84, %p85
      %p87 = scmp.ne.s32.totalorder %s78, %s79
      %p88 = scmp.eq.s32.totalorder %s21, 0
      %p89 = por %p87, %p88
      %p90 = scmp.ne.s32.totalorder %s78, %s79
      %p91 = scmp.eq.s32.totalorder %s22, 1
      %p92 = por %p90, %p91
      %p94 = scmp.ne.s32.totalorder %s79, %s93
      %p95 = scmp.eq.s32.totalorder %s22, 0
      %p96 = por %p94, %p95
      %s98 = sadd.s32 %s97, 1
      %p101 = scmp.eq.s32.totalorder %s16, 1
      %p102 = scmp.ne.s32.totalorder %s97, %s99
      %p103 = scmp.eq.s32.totalorder %s16, 0
      %p104 = por %p102, %p103
      %p105 = scmp.ne.s32.totalorder %s97, %s99
      %p106 = scmp.eq.s32.totalorder %s21, 1
      %p107 = por %p105, %p106
      %p108 = scmp.ne.s32.totalorder %s99, %s100
      %p109 = scmp.eq.s32.totalorder %s21, 0
      %p110 = por %p108, %p109
      %p111 = scmp.ne.s32.totalorder %s99, %s100
      %p112 = scmp.eq.s32.totalorder %s22, 1
      %p113 = por %p111, %p112
      %p115 = scmp.ne.s32.totalorder %s100, %s114
      %p116 = scmp.eq.s32.totalorder %s22, 0
      %p117 = por %p115, %p116
      %s119 = sadd.s32 %s118, 1
      %p122 = scmp.eq.s32.totalorder %s16, 1
      %p123 = scmp.ne.s32.totalorder %s118, %s120
      %p124 = scmp.eq.s32.totalorder %s16, 0
      %p125 = por %p123, %p124
      %p126 = scmp.ne.s32.totalorder %s118, %s120
      %p127 = scmp.eq.s32.totalorder %s21, 1
      %p128 = por %p126, %p127
      %p129 = scmp.ne.s32.totalorder %s120, %s121
      %p130 = scmp.eq.s32.totalorder %s21, 0
      %p131 = por %p129, %p130
      %p132 = scmp.ne.s32.totalorder %s120, %s121
      %p133 = scmp.eq.s32.totalorder %s22, 1
      %p134 = por %p132, %p133
      %p136 = scmp.ne.s32.totalorder %s121, %s135
      %p137 = scmp.eq.s32.totalorder %s22, 0
      %p138 = por %p136, %p137
      %s140 = sadd.s32 %s139, 1
      %p143 = scmp.eq.s32.totalorder %s16, 1
      %p144 = scmp.ne.s32.totalorder %s139, %s141
      %p145 = scmp.eq.s32.totalorder %s16, 0
      %p146 = por %p144, %p145
      %p147 = scmp.ne.s32.totalorder %s139, %s141
      %p148 = scmp.eq.s32.totalorder %s21, 1
      %p149 = por %p147, %p148
      %p150 = scmp.ne.s32.totalorder %s141, %s142
      %p151 = scmp.eq.s32.totalorder %s21, 0
      %p152 = por %p150, %p151
      %p153 = scmp.ne.s32.totalorder %s141, %s142
      %p154 = scmp.eq.s32.totalorder %s22, 1
      %p155 = por %p153, %p154
      %p157 = scmp.ne.s32.totalorder %s142, %s156
      %p158 = scmp.eq.s32.totalorder %s22, 0
      %p159 = por %p157, %p158
      %s161 = sadd.s32 %s160, 1
      %p164 = scmp.eq.s32.totalorder %s16, 1
      %p165 = scmp.ne.s32.totalorder %s160, %s162
      %p166 = scmp.eq.s32.totalorder %s16, 0
      %p167 = por %p165, %p166
      %p168 = scmp.ne.s32.totalorder %s160, %s162
      %p169 = scmp.eq.s32.totalorder %s21, 1
      %p170 = por %p168, %p169
      %p171 = scmp.ne.s32.totalorder %s162, %s163
      %p172 = scmp.eq.s32.totalorder %s21, 0
      %p173 = por %p171, %p172
      %p174 = scmp.ne.s32.totalorder %s162, %s163
      %p175 = scmp.eq.s32.totalorder %s22, 1
      %p176 = por %p174, %p175
      %p178 = scmp.ne.s32.totalorder %s163, %s177
      %p179 = scmp.eq.s32.totalorder %s22, 0
      %p180 = por %p178, %p179
      %s181 = ssub.s32 %s16, %s23
      %p182 = scmp.eq.s32.totalorder %s181, 0
      %s184 = sadd.s32 %s183, 1
      %s185 = scalar_select %p182, %s183, %s184
      %p188 = pneg %p182
      %p189 = scmp.eq.s32.totalorder %s16, 1
      %p190 = por %p188, %p189
      %p191 = scmp.ne.s32.totalorder %s183, %s186
      %p192 = scmp.eq.s32.totalorder %s16, 0
      %p193 = por %p191, %p192
      %p194 = scmp.ne.s32.totalorder %s183, %s186
      %p195 = scmp.eq.s32.totalorder %s21, 1
      %p196 = por %p194, %p195
      %p197 = scmp.ne.s32.totalorder %s186, %s187
      %p198 = scmp.eq.s32.totalorder %s21, 0
      %p199 = por %p197, %p198
      %p200 = scmp.ne.s32.totalorder %s186, %s187
      %p201 = scmp.eq.s32.totalorder %s22, 1
      %p202 = por %p200, %p201
      %p204 = scmp.ne.s32.totalorder %s187, %s203
      %p205 = scmp.eq.s32.totalorder %s22, 0
      %p206 = por %p204, %p205
      %p207 = scmp.le.s32.totalorder 1, %s16
      %p208 = scmp.lt.s32.totalorder %s16, 3
      %p209 = pnand %p207, %p208
      %p210 = pneg %p209
      // Predicated region
      $region9: #{tpu_custom_call.1} parent=5 // pred_check
        _
      $region10: #{tpu_custom_call.1} parent=5 // pred_check_branch
        %212 = sbr.rel (%p209) target = $region12
      $region11: #{tpu_custom_call.1} parent=5 // pred_region
        %s213 = ssub.s32 %s16, 1
        // Predicated region
        $region13: #{tpu_custom_call.1} parent=11 // pred_check
          %p214 = pneg %p89
        $region14: #{tpu_custom_call.1} parent=11 // pred_check_branch
          %216 = sbr.rel (%p214) target = $region16
        $region15: #{tpu_custom_call.1} parent=11 // pred_region
          _
        $region16: #{tpu_custom_call.1} parent=11 // pred_fallthru
          _
        // Predicated region
        $region17: #{tpu_custom_call.1} parent=11 // pred_check
          %p217 = pneg %p110
        $region18: #{tpu_custom_call.1} parent=11 // pred_check_branch
          %219 = sbr.rel (%p217) target = $region20
        $region19: #{tpu_custom_call.1} parent=11 // pred_region
          _
        $region20: #{tpu_custom_call.1} parent=11 // pred_fallthru
          _
        // Predicated region
        $region21: #{tpu_custom_call.1} parent=11 // pred_check
          %p220 = pneg %p131
        $region22: #{tpu_custom_call.1} parent=11 // pred_check_branch
          %222 = sbr.rel (%p220) target = $region24
        $region23: #{tpu_custom_call.1} parent=11 // pred_region
          _
        $region24: #{tpu_custom_call.1} parent=11 // pred_fallthru
          _
        // Predicated region
        $region25: #{tpu_custom_call.1} parent=11 // pred_check
          %p223 = pneg %p152
        $region26: #{tpu_custom_call.1} parent=11 // pred_check_branch
          %225 = sbr.rel (%p223) target = $region28
        $region27: #{tpu_custom_call.1} parent=11 // pred_region
          _
        $region28: #{tpu_custom_call.1} parent=11 // pred_fallthru
          _
        // Predicated region
        $region29: #{tpu_custom_call.1} parent=11 // pred_check
          %p226 = pneg %p173
        $region30: #{tpu_custom_call.1} parent=11 // pred_check_branch
          %228 = sbr.rel (%p226) target = $region32
        $region31: #{tpu_custom_call.1} parent=11 // pred_region
          _
        $region32: #{tpu_custom_call.1} parent=11 // pred_fallthru
          _
      $region12: #{tpu_custom_call.1} parent=5 // pred_fallthru
        _
      %p229 = scmp.lt.s32.totalorder %s16, 2
      // Predicated region
      $region33: #{tpu_custom_call.1} parent=5 // pred_check
        %p230 = pneg %p229
      $region34: #{tpu_custom_call.1} parent=5 // pred_check_branch
        %232 = sbr.rel (%p230) target = $region36
      $region35: #{tpu_custom_call.1} parent=5 // pred_region
        // Predicated region
        $region37: #{tpu_custom_call.1} parent=35 // pred_check
          %p233 = pneg %p36
        $region38: #{tpu_custom_call.1} parent=35 // pred_check_branch
          %235 = sbr.rel (%p233) target = $region40
        $region39: #{tpu_custom_call.1} parent=35 // pred_region
          %p236 = scmp.lt.s32.totalorder %s16, 1
          %s237 = scalar_select %p236, %s16, 1
          %s238 = smul.addr %s237, 8
          %s239 = scalar_lea.vmem %s0, %s238
        $region40: #{tpu_custom_call.1} parent=35 // pred_fallthru
          _
        // Predicated region
        $region41: #{tpu_custom_call.1} parent=35 // pred_check
          %p240 = pneg %p62
        $region42: #{tpu_custom_call.1} parent=35 // pred_check_branch
          %242 = sbr.rel (%p240) target = $region44
        $region43: #{tpu_custom_call.1} parent=35 // pred_region
          %p243 = scmp.lt.s32.totalorder %s16, 1
          %s244 = scalar_select %p243, %s16, 1
          %s245 = smul.addr %s244, 8
          %s246 = scalar_lea.vmem %s1, %s245
        $region44: #{tpu_custom_call.1} parent=35 // pred_fallthru
          _
      $region36: #{tpu_custom_call.1} parent=5 // pred_fallthru
        _
      %p247 = scmp.le.s32.totalorder 1, %s16
      %p248 = scmp.lt.s32.totalorder %s16, 3
      %p249 = pnand %p247, %p248
      %p250 = pneg %p249
      // Predicated region
      $region45: #{tpu_custom_call.1} parent=5 // pred_check
        _
      $region46: #{tpu_custom_call.1} parent=5 // pred_check_branch
        %252 = sbr.rel (%p249) target = $region48
      $region47: #{tpu_custom_call.1} parent=5 // pred_region
        %s253 = ssub.s32 %s16, 1
        %p254 = scmp.lt.s32.totalorder %s21, 1
        %s255 = scalar_select %p254, %s21, 1
        %s256 = smul.addr %s255, 8
        %s257 = scalar_lea.vmem %s0, %s256
        %p258 = pneg %p42
        %p259 = pneg %p39
        %p260 = scmp.lt.s32.totalorder %s21, 1
        %s261 = scalar_select %p260, %s21, 1
        %s262 = smul.addr %s261, 8
        %s263 = scalar_lea.vmem %s1, %s262
        %p264 = pneg %p68
        %p265 = pneg %p65
        %p266 = pneg %p89
        %p267 = pneg %p86
        %p268 = pneg %p110
        %p269 = pneg %p107
        %p270 = pneg %p131
        %p271 = pneg %p128
        %p272 = pneg %p152
        %p273 = pneg %p149
        %p274 = pneg %p173
        %p275 = pneg %p170
        %p276 = pneg %p199
        %p277 = pneg %p196
        %s278 = sand.u32 %s186, 1
        %s279 = scalar_lea.sflag [#allocation4], %s278
        %s280 = sand.u32 %s186, 1
        %s281 = smul.addr %s280, 8
        %s282 = scalar_lea.vmem [#allocation3], %s281
        %p283 = scmp.lt.s32.totalorder %s21, 1
        %s284 = scalar_select %p283, %s21, 1
        %s285 = smul.addr %s284, 8
        %s286 = scalar_lea.vmem %s0, %s285
        %p287 = scmp.lt.s32.totalorder %s21, 1
        %s288 = scalar_select %p287, %s21, 1
        %s289 = smul.addr %s288, 8
        %s290 = scalar_lea.vmem %s1, %s289
        %v291 = vld [vmem:[%s2] sm:$0xff]
        %v292 = vld [vmem:[%s2 + $0x8] sm:$0xff]
        %v293 = vld [vmem:[%s2 + $0x10] sm:$0xff]
        %v294 = vld [vmem:[%s2 + $0x18] sm:$0xff]
        %v295 = vld [vmem:[%s3] sm:$0xff]
        %v296 = vld [vmem:[%s3 + $0x8] sm:$0xff]
        %v297 = vld [vmem:[%s3 + $0x10] sm:$0xff]
        %v298 = vld [vmem:[%s3 + $0x18] sm:$0xff]
        %v299 = vld [vmem:[%s290] sm:$0xff]
        %v300 = vld [vmem:[%s4] sm:$0x1]
        %v302 = vlaneseq
        %v303 = vshrl.u32 %v302, 7
        %v304 = vsub.s32 0, %v303
        %v305 = vrot.slane %v300, %v304
        %v307 = vlaneseq
        %v308 = vand.u32 %v307, 127
        %v309 = vld [vmem:[%s286] sm:$0xff]
        %310 = vset.pattern.permute.xlu0 0
        %311 = vperm.xlu0 %310, %v309
        %v312 = vpop.permute.xlu0 %311
        %vm313 = vcmp.eq.s32.totalorder %v308, %v312
        %v314 = vsel %vm313, 1, 0
        %v315 = vcvt.s32.f32 %v314
        %vm316 = vcmask 261120
        %v318 = vsel %vm316, %v315, 0
        %320 = vmatprep.subr.mxu0 0.0
        %321 = vmatpush1.msra.mxu0 0.0
        %322 = vmatprep.subr.mxu0 0.0
        %323 = vmatpush1.msra.mxu0 0.0
        %324 = vmatprep.subr.mxu0 0.0
        %325 = vmatpush1.msra.mxu0 0.0
        %326 = vmatprep.subr.mxu0 0.0
        %327 = vmatpush1.msra.mxu0 0.0
        %328 = vmatprep.subr.mxu0 0.0
        %329 = vmatpush1.msra.mxu0 0.0
        %330 = vmatprep.subr.mxu0 0.0
        %331 = vmatpush1.msra.mxu0 0.0
        %332 = vmatprep.subr.mxu0 0.0
        %333 = vmatpush1.msra.mxu0 0.0
        %334 = vmatprep.subr.mxu0 0.0
        %335 = vmatpush1.msra.mxu0 0.0
        %336 = vmatprep.subr.mxu0 0.0
        %337 = vmatpush1.msra.mxu0 0.0
        %338 = vmatprep.subr.mxu0 0.0
        %339 = vmatpush1.msra.mxu0 0.0
        %340 = vmatprep.subr.mxu0 0.0
        %341 = vmatpush1.msra.mxu0 0.0
        %342 = vmatprep.subr.mxu0 0.0
        %343 = vmatpush1.msra.mxu0 0.0
        %344 = vmatprep.subr.mxu0 0.0
        %345 = vmatpush1.msra.mxu0 %v294
        %346 = vmatprep.subr.mxu0 0.0
        %347 = vmatpush1.msra.mxu0 %v293
        %348 = vmatprep.subr.mxu0 0.0
        %349 = vmatpush1.msra.mxu0 %v292
        %350 = vmatprep.subr.mxu0 0.0
        %351 = vmatpush1.msra.mxu0 %v291
        %352 = vmatprep.subr.mxu0 0.0
        %353 = vmatpush2.msra.mxu0 0.0
        %354 = vmatprep.subr.mxu0 0.0
        %355 = vmatpush2.msra.mxu0 0.0
        %356 = vmatprep.subr.mxu0 0.0
        %357 = vmatpush2.msra.mxu0 0.0
        %358 = vmatprep.subr.mxu0 0.0
        %359 = vmatpush2.msra.mxu0 0.0
        %360 = vmatprep.subr.mxu0 0.0
        %361 = vmatpush2.msra.mxu0 0.0
        %362 = vmatprep.subr.mxu0 0.0
        %363 = vmatpush2.msra.mxu0 0.0
        %364 = vmatprep.subr.mxu0 0.0
        %365 = vmatpush2.msra.mxu0 0.0
        %366 = vmatprep.subr.mxu0 0.0
        %367 = vmatpush2.msra.mxu0 0.0
        %368 = vmatprep.subr.mxu0 0.0
        %369 = vmatpush2.msra.mxu0 0.0
        %370 = vmatprep.subr.mxu0 0.0
        %371 = vmatpush2.msra.mxu0 0.0
        %372 = vmatprep.subr.mxu0 0.0
        %373 = vmatpush2.msra.mxu0 0.0
        %374 = vmatprep.subr.mxu0 0.0
        %375 = vmatpush2.msra.mxu0 0.0
        %376 = vmatprep.subr.mxu0 0.0
        %377 = vmatpush2.msra.mxu0 0.0
        %378 = vmatprep.subr.mxu0 0.0
        %379 = vmatpush2.msra.mxu0 0.0
        %380 = vmatprep.subr.mxu0 0.0
        %381 = vmatpush2.msra.mxu0 0.0
        %382 = vmatprep.subr.mxu0 0.0
        %383 = vmatpush2.msra.mxu0 0.0
        %384 = vmatprep.mubr.f32.mxu0 0.0
        %385 = vmatmul.mubr.f32.gmra.mxu0 %v318
        %v386 = vpop.f32.mrf.mxu0
        %v387 = vadd.f32 %v305, %v386
        %v388 = vpop.f32.mrf.mxu0
        %389 = vdwg.mxu0
        %390 = vst [vmem:[#allocation2] sm:$0xff] %v387
        %v391 = vld [vmem:[%s286] sm:$0xff]
        %392 = vset.pattern.permute.xlu0 1
        %393 = vperm.xlu0 %392, %v391
        %v394 = vpop.permute.xlu0 %393
        %vm395 = vcmp.eq.s32.totalorder %v308, %v394
        %v396 = vsel %vm395, 1, 0
        %v397 = vcvt.s32.f32 %v396
        %v399 = vsel %vm316, %v397, 0
        %401 = vmatprep.subr.mxu0 0.0
        %402 = vmatpush1.msra.mxu0 0.0
        %403 = vmatprep.subr.mxu0 0.0
        %404 = vmatpush1.msra.mxu0 0.0
        %405 = vmatprep.subr.mxu0 0.0
        %406 = vmatpush1.msra.mxu0 0.0
        %407 = vmatprep.subr.mxu0 0.0
        %408 = vmatpush1.msra.mxu0 0.0
        %409 = vmatprep.subr.mxu0 0.0
        %410 = vmatpush1.msra.mxu0 0.0
        %411 = vmatprep.subr.mxu0 0.0
        %412 = vmatpush1.msra.mxu0 0.0
        %413 = vmatprep.subr.mxu0 0.0
        %414 = vmatpush1.msra.mxu0 0.0
        %415 = vmatprep.subr.mxu0 0.0
        %416 = vmatpush1.msra.mxu0 0.0
        %417 = vmatprep.subr.mxu0 0.0
        %418 = vmatpush1.msra.mxu0 0.0
        %419 = vmatprep.subr.mxu0 0.0
        %420 = vmatpush1.msra.mxu0 0.0
        %421 = vmatprep.subr.mxu0 0.0
        %422 = vmatpush1.msra.mxu0 0.0
        %423 = vmatprep.subr.mxu0 0.0
        %424 = vmatpush1.msra.mxu0 0.0
        %425 = vmatprep.subr.mxu0 0.0
        %426 = vmatpush1.msra.mxu0 %v294
        %427 = vmatprep.subr.mxu0 0.0
        %428 = vmatpush1.msra.mxu0 %v293
        %429 = vmatprep.subr.mxu0 0.0
        %430 = vmatpush1.msra.mxu0 %v292
        %431 = vmatprep.subr.mxu0 0.0
        %432 = vmatpush1.msra.mxu0 %v291
        %433 = vmatprep.subr.mxu0 0.0
        %434 = vmatpush2.msra.mxu0 0.0
        %435 = vmatprep.subr.mxu0 0.0
        %436 = vmatpush2.msra.mxu0 0.0
        %437 = vmatprep.subr.mxu0 0.0
        %438 = vmatpush2.msra.mxu0 0.0
        %439 = vmatprep.subr.mxu0 0.0
        %440 = vmatpush2.msra.mxu0 0.0
        %441 = vmatprep.subr.mxu0 0.0
        %442 = vmatpush2.msra.mxu0 0.0
        %443 = vmatprep.subr.mxu0 0.0
        %444 = vmatpush2.msra.mxu0 0.0
        %445 = vmatprep.subr.mxu0 0.0
        %446 = vmatpush2.msra.mxu0 0.0
        %447 = vmatprep.subr.mxu0 0.0
        %448 = vmatpush2.msra.mxu0 0.0
        %449 = vmatprep.subr.mxu0 0.0
        %450 = vmatpush2.msra.mxu0 0.0
        %451 = vmatprep.subr.mxu0 0.0
        %452 = vmatpush2.msra.mxu0 0.0
        %453 = vmatprep.subr.mxu0 0.0
        %454 = vmatpush2.msra.mxu0 0.0
        %455 = vmatprep.subr.mxu0 0.0
        %456 = vmatpush2.msra.mxu0 0.0
        %457 = vmatprep.subr.mxu0 0.0
        %458 = vmatpush2.msra.mxu0 0.0
        %459 = vmatprep.subr.mxu0 0.0
        %460 = vmatpush2.msra.mxu0 0.0
        %461 = vmatprep.subr.mxu0 0.0
        %462 = vmatpush2.msra.mxu0 0.0
        %463 = vmatprep.subr.mxu0 0.0
        %464 = vmatpush2.msra.mxu0 0.0
        %465 = vmatprep.mubr.f32.mxu0 0.0
        %466 = vmatmul.mubr.f32.gmra.mxu0 %v399
        %v467 = vpop.f32.mrf.mxu0
        %v468 = vadd.f32 %v305, %v467
        %v469 = vpop.f32.mrf.mxu0
        %470 = vdwg.mxu0
        %s471 = scalar_lea.vmem [#allocation2], 8
        %472 = vst [vmem:[%s471] sm:$0xff] %v468
        %v473 = vld [vmem:[%s286] sm:$0xff]
        %474 = vset.pattern.permute.xlu0 2
        %475 = vperm.xlu0 %474, %v473
        %v476 = vpop.permute.xlu0 %475
        %vm477 = vcmp.eq.s32.totalorder %v308, %v476
        %v478 = vsel %vm477, 1, 0
        %v479 = vcvt.s32.f32 %v478
        %v481 = vsel %vm316, %v479, 0
        %483 = vmatprep.subr.mxu0 0.0
        %484 = vmatpush1.msra.mxu0 0.0
        %485 = vmatprep.subr.mxu0 0.0
        %486 = vmatpush1.msra.mxu0 0.0
        %487 = vmatprep.subr.mxu0 0.0
        %488 = vmatpush1.msra.mxu0 0.0
        %489 = vmatprep.subr.mxu0 0.0
        %490 = vmatpush1.msra.mxu0 0.0
        %491 = vmatprep.subr.mxu0 0.0
        %492 = vmatpush1.msra.mxu0 0.0
        %493 = vmatprep.subr.mxu0 0.0
        %494 = vmatpush1.msra.mxu0 0.0
        %495 = vmatprep.subr.mxu0 0.0
        %496 = vmatpush1.msra.mxu0 0.0
        %497 = vmatprep.subr.mxu0 0.0
        %498 = vmatpush1.msra.mxu0 0.0
        %499 = vmatprep.subr.mxu0 0.0
        %500 = vmatpush1.msra.mxu0 0.0
        %501 = vmatprep.subr.mxu0 0.0
        %502 = vmatpush1.msra.mxu0 0.0
        %503 = vmatprep.subr.mxu0 0.0
        %504 = vmatpush1.msra.mxu0 0.0
        %505 = vmatprep.subr.mxu0 0.0
        %506 = vmatpush1.msra.mxu0 0.0
        %507 = vmatprep.subr.mxu0 0.0
        %508 = vmatpush1.msra.mxu0 %v294
        %509 = vmatprep.subr.mxu0 0.0
        %510 = vmatpush1.msra.mxu0 %v293
        %511 = vmatprep.subr.mxu0 0.0
        %512 = vmatpush1.msra.mxu0 %v292
        %513 = vmatprep.subr.mxu0 0.0
        %514 = vmatpush1.msra.mxu0 %v291
        %515 = vmatprep.subr.mxu0 0.0
        %516 = vmatpush2.msra.mxu0 0.0
        %517 = vmatprep.subr.mxu0 0.0
        %518 = vmatpush2.msra.mxu0 0.0
        %519 = vmatprep.subr.mxu0 0.0
        %520 = vmatpush2.msra.mxu0 0.0
        %521 = vmatprep.subr.mxu0 0.0
        %522 = vmatpush2.msra.mxu0 0.0
        %523 = vmatprep.subr.mxu0 0.0
        %524 = vmatpush2.msra.mxu0 0.0
        %525 = vmatprep.subr.mxu0 0.0
        %526 = vmatpush2.msra.mxu0 0.0
        %527 = vmatprep.subr.mxu0 0.0
        %528 = vmatpush2.msra.mxu0 0.0
        %529 = vmatprep.subr.mxu0 0.0
        %530 = vmatpush2.msra.mxu0 0.0
        %531 = vmatprep.subr.mxu0 0.0
        %532 = vmatpush2.msra.mxu0 0.0
        %533 = vmatprep.subr.mxu0 0.0
        %534 = vmatpush2.msra.mxu0 0.0
        %535 = vmatprep.subr.mxu0 0.0
        %536 = vmatpush2.msra.mxu0 0.0
        %537 = vmatprep.subr.mxu0 0.0
        %538 = vmatpush2.msra.mxu0 0.0
        %539 = vmatprep.subr.mxu0 0.0
        %540 = vmatpush2.msra.mxu0 0.0
        %541 = vmatprep.subr.mxu0 0.0
        %542 = vmatpush2.msra.mxu0 0.0
        %543 = vmatprep.subr.mxu0 0.0
        %544 = vmatpush2.msra.mxu0 0.0
        %545 = vmatprep.subr.mxu0 0.0
        %546 = vmatpush2.msra.mxu0 0.0
        %547 = vmatprep.mubr.f32.mxu0 0.0
        %548 = vmatmul.mubr.f32.gmra.mxu0 %v481
        %v549 = vpop.f32.mrf.mxu0
        %v550 = vadd.f32 %v305, %v549
        %v551 = vpop.f32.mrf.mxu0
        %552 = vdwg.mxu0
        %s553 = scalar_lea.vmem [#allocation2], 16
        %554 = vst [vmem:[%s553] sm:$0xff] %v550
        %v555 = vld [vmem:[%s286] sm:$0xff]
        %556 = vset.pattern.permute.xlu0 3
        %557 = vperm.xlu0 %556, %v555
        %v558 = vpop.permute.xlu0 %557
        %vm559 = vcmp.eq.s32.totalorder %v308, %v558
        %v560 = vsel %vm559, 1, 0
        %v561 = vcvt.s32.f32 %v560
        %v563 = vsel %vm316, %v561, 0
        %565 = vmatprep.subr.mxu0 0.0
        %566 = vmatpush1.msra.mxu0 0.0
        %567 = vmatprep.subr.mxu0 0.0
        %568 = vmatpush1.msra.mxu0 0.0
        %569 = vmatprep.subr.mxu0 0.0
        %570 = vmatpush1.msra.mxu0 0.0
        %571 = vmatprep.subr.mxu0 0.0
        %572 = vmatpush1.msra.mxu0 0.0
        %573 = vmatprep.subr.mxu0 0.0
        %574 = vmatpush1.msra.mxu0 0.0
        %575 = vmatprep.subr.mxu0 0.0
        %576 = vmatpush1.msra.mxu0 0.0
        %577 = vmatprep.subr.mxu0 0.0
        %578 = vmatpush1.msra.mxu0 0.0
        %579 = vmatprep.subr.mxu0 0.0
        %580 = vmatpush1.msra.mxu0 0.0
        %581 = vmatprep.subr.mxu0 0.0
        %582 = vmatpush1.msra.mxu0 0.0
        %583 = vmatprep.subr.mxu0 0.0
        %584 = vmatpush1.msra.mxu0 0.0
        %585 = vmatprep.subr.mxu0 0.0
        %586 = vmatpush1.msra.mxu0 0.0
        %587 = vmatprep.subr.mxu0 0.0
        %588 = vmatpush1.msra.mxu0 0.0
        %589 = vmatprep.subr.mxu0 0.0
        %590 = vmatpush1.msra.mxu0 %v294
        %591 = vmatprep.subr.mxu0 0.0
        %592 = vmatpush1.msra.mxu0 %v293
        %593 = vmatprep.subr.mxu0 0.0
        %594 = vmatpush1.msra.mxu0 %v292
        %595 = vmatprep.subr.mxu0 0.0
        %596 = vmatpush1.msra.mxu0 %v291
        %597 = vmatprep.subr.mxu0 0.0
        %598 = vmatpush2.msra.mxu0 0.0
        %599 = vmatprep.subr.mxu0 0.0
        %600 = vmatpush2.msra.mxu0 0.0
        %601 = vmatprep.subr.mxu0 0.0
        %602 = vmatpush2.msra.mxu0 0.0
        %603 = vmatprep.subr.mxu0 0.0
        %604 = vmatpush2.msra.mxu0 0.0
        %605 = vmatprep.subr.mxu0 0.0
        %606 = vmatpush2.msra.mxu0 0.0
        %607 = vmatprep.subr.mxu0 0.0
        %608 = vmatpush2.msra.mxu0 0.0
        %609 = vmatprep.subr.mxu0 0.0
        %610 = vmatpush2.msra.mxu0 0.0
        %611 = vmatprep.subr.mxu0 0.0
        %612 = vmatpush2.msra.mxu0 0.0
        %613 = vmatprep.subr.mxu0 0.0
        %614 = vmatpush2.msra.mxu0 0.0
        %615 = vmatprep.subr.mxu0 0.0
        %616 = vmatpush2.msra.mxu0 0.0
        %617 = vmatprep.subr.mxu0 0.0
        %618 = vmatpush2.msra.mxu0 0.0
        %619 = vmatprep.subr.mxu0 0.0
        %620 = vmatpush2.msra.mxu0 0.0
        %621 = vmatprep.subr.mxu0 0.0
        %622 = vmatpush2.msra.mxu0 0.0
        %623 = vmatprep.subr.mxu0 0.0
        %624 = vmatpush2.msra.mxu0 0.0
        %625 = vmatprep.subr.mxu0 0.0
        %626 = vmatpush2.msra.mxu0 0.0
        %627 = vmatprep.subr.mxu0 0.0
        %628 = vmatpush2.msra.mxu0 0.0
        %629 = vmatprep.mubr.f32.mxu0 0.0
        %630 = vmatmul.mubr.f32.gmra.mxu0 %v563
        %v631 = vpop.f32.mrf.mxu0
        %v632 = vadd.f32 %v305, %v631
        %v633 = vpop.f32.mrf.mxu0
        %634 = vdwg.mxu0
        %s635 = scalar_lea.vmem [#allocation2], 24
        %636 = vst [vmem:[%s635] sm:$0xff] %v632
        %v637 = vld [vmem:[%s286] sm:$0xff]
        %638 = vset.pattern.permute.xlu0 4
        %639 = vperm.xlu0 %638, %v637
        %v640 = vpop.permute.xlu0 %639
        %vm641 = vcmp.eq.s32.totalorder %v308, %v640
        %v642 = vsel %vm641, 1, 0
        %v643 = vcvt.s32.f32 %v642
        %v645 = vsel %vm316, %v643, 0
        %647 = vmatprep.subr.mxu0 0.0
        %648 = vmatpush1.msra.mxu0 0.0
        %649 = vmatprep.subr.mxu0 0.0
        %650 = vmatpush1.msra.mxu0 0.0
        %651 = vmatprep.subr.mxu0 0.0
        %652 = vmatpush1.msra.mxu0 0.0
        %653 = vmatprep.subr.mxu0 0.0
        %654 = vmatpush1.msra.mxu0 0.0
        %655 = vmatprep.subr.mxu0 0.0
        %656 = vmatpush1.msra.mxu0 0.0
        %657 = vmatprep.subr.mxu0 0.0
        %658 = vmatpush1.msra.mxu0 0.0
        %659 = vmatprep.subr.mxu0 0.0
        %660 = vmatpush1.msra.mxu0 0.0
        %661 = vmatprep.subr.mxu0 0.0
        %662 = vmatpush1.msra.mxu0 0.0
        %663 = vmatprep.subr.mxu0 0.0
        %664 = vmatpush1.msra.mxu0 0.0
        %665 = vmatprep.subr.mxu0 0.0
        %666 = vmatpush1.msra.mxu0 0.0
        %667 = vmatprep.subr.mxu0 0.0
        %668 = vmatpush1.msra.mxu0 0.0
        %669 = vmatprep.subr.mxu0 0.0
        %670 = vmatpush1.msra.mxu0 0.0
        %671 = vmatprep.subr.mxu0 0.0
        %672 = vmatpush1.msra.mxu0 %v294
        %673 = vmatprep.subr.mxu0 0.0
        %674 = vmatpush1.msra.mxu0 %v293
        %675 = vmatprep.subr.mxu0 0.0
        %676 = vmatpush1.msra.mxu0 %v292
        %677 = vmatprep.subr.mxu0 0.0
        %678 = vmatpush1.msra.mxu0 %v291
        %679 = vmatprep.subr.mxu0 0.0
        %680 = vmatpush2.msra.mxu0 0.0
        %681 = vmatprep.subr.mxu0 0.0
        %682 = vmatpush2.msra.mxu0 0.0
        %683 = vmatprep.subr.mxu0 0.0
        %684 = vmatpush2.msra.mxu0 0.0
        %685 = vmatprep.subr.mxu0 0.0
        %686 = vmatpush2.msra.mxu0 0.0
        %687 = vmatprep.subr.mxu0 0.0
        %688 = vmatpush2.msra.mxu0 0.0
        %689 = vmatprep.subr.mxu0 0.0
        %690 = vmatpush2.msra.mxu0 0.0
        %691 = vmatprep.subr.mxu0 0.0
        %692 = vmatpush2.msra.mxu0 0.0
        %693 = vmatprep.subr.mxu0 0.0
        %694 = vmatpush2.msra.mxu0 0.0
        %695 = vmatprep.subr.mxu0 0.0
        %696 = vmatpush2.msra.mxu0 0.0
        %697 = vmatprep.subr.mxu0 0.0
        %698 = vmatpush2.msra.mxu0 0.0
        %699 = vmatprep.subr.mxu0 0.0
        %700 = vmatpush2.msra.mxu0 0.0
        %701 = vmatprep.subr.mxu0 0.0
        %702 = vmatpush2.msra.mxu0 0.0
        %703 = vmatprep.subr.mxu0 0.0
        %704 = vmatpush2.msra.mxu0 0.0
        %705 = vmatprep.subr.mxu0 0.0
        %706 = vmatpush2.msra.mxu0 0.0
        %707 = vmatprep.subr.mxu0 0.0
        %708 = vmatpush2.msra.mxu0 0.0
        %709 = vmatprep.subr.mxu0 0.0
        %710 = vmatpush2.msra.mxu0 0.0
        %711 = vmatprep.mubr.f32.mxu0 0.0
        %712 = vmatmul.mubr.f32.gmra.mxu0 %v645
        %v713 = vpop.f32.mrf.mxu0
        %v714 = vadd.f32 %v305, %v713
        %v715 = vpop.f32.mrf.mxu0
        %716 = vdwg.mxu0
        %s717 = scalar_lea.vmem [#allocation2], 32
        %718 = vst [vmem:[%s717] sm:$0xff] %v714
        %v719 = vld [vmem:[%s286] sm:$0xff]
        %720 = vset.pattern.permute.xlu0 5
        %721 = vperm.xlu0 %720, %v719
        %v722 = vpop.permute.xlu0 %721
        %vm723 = vcmp.eq.s32.totalorder %v308, %v722
        %v724 = vsel %vm723, 1, 0
        %v725 = vcvt.s32.f32 %v724
        %v727 = vsel %vm316, %v725, 0
        %729 = vmatprep.subr.mxu0 0.0
        %730 = vmatpush1.msra.mxu0 0.0
        %731 = vmatprep.subr.mxu0 0.0
        %732 = vmatpush1.msra.mxu0 0.0
        %733 = vmatprep.subr.mxu0 0.0
        %734 = vmatpush1.msra.mxu0 0.0
        %735 = vmatprep.subr.mxu0 0.0
        %736 = vmatpush1.msra.mxu0 0.0
        %737 = vmatprep.subr.mxu0 0.0
        %738 = vmatpush1.msra.mxu0 0.0
        %739 = vmatprep.subr.mxu0 0.0
        %740 = vmatpush1.msra.mxu0 0.0
        %741 = vmatprep.subr.mxu0 0.0
        %742 = vmatpush1.msra.mxu0 0.0
        %743 = vmatprep.subr.mxu0 0.0
        %744 = vmatpush1.msra.mxu0 0.0
        %745 = vmatprep.subr.mxu0 0.0
        %746 = vmatpush1.msra.mxu0 0.0
        %747 = vmatprep.subr.mxu0 0.0
        %748 = vmatpush1.msra.mxu0 0.0
        %749 = vmatprep.subr.mxu0 0.0
        %750 = vmatpush1.msra.mxu0 0.0
        %751 = vmatprep.subr.mxu0 0.0
        %752 = vmatpush1.msra.mxu0 0.0
        %753 = vmatprep.subr.mxu0 0.0
        %754 = vmatpush1.msra.mxu0 %v294
        %755 = vmatprep.subr.mxu0 0.0
        %756 = vmatpush1.msra.mxu0 %v293
        %757 = vmatprep.subr.mxu0 0.0
        %758 = vmatpush1.msra.mxu0 %v292
        %759 = vmatprep.subr.mxu0 0.0
        %760 = vmatpush1.msra.mxu0 %v291
        %761 = vmatprep.subr.mxu0 0.0
        %762 = vmatpush2.msra.mxu0 0.0
        %763 = vmatprep.subr.mxu0 0.0
        %764 = vmatpush2.msra.mxu0 0.0
        %765 = vmatprep.subr.mxu0 0.0
        %766 = vmatpush2.msra.mxu0 0.0
        %767 = vmatprep.subr.mxu0 0.0
        %768 = vmatpush2.msra.mxu0 0.0
        %769 = vmatprep.subr.mxu0 0.0
        %770 = vmatpush2.msra.mxu0 0.0
        %771 = vmatprep.subr.mxu0 0.0
        %772 = vmatpush2.msra.mxu0 0.0
        %773 = vmatprep.subr.mxu0 0.0
        %774 = vmatpush2.msra.mxu0 0.0
        %775 = vmatprep.subr.mxu0 0.0
        %776 = vmatpush2.msra.mxu0 0.0
        %777 = vmatprep.subr.mxu0 0.0
        %778 = vmatpush2.msra.mxu0 0.0
        %779 = vmatprep.subr.mxu0 0.0
        %780 = vmatpush2.msra.mxu0 0.0
        %781 = vmatprep.subr.mxu0 0.0
        %782 = vmatpush2.msra.mxu0 0.0
        %783 = vmatprep.subr.mxu0 0.0
        %784 = vmatpush2.msra.mxu0 0.0
        %785 = vmatprep.subr.mxu0 0.0
        %786 = vmatpush2.msra.mxu0 0.0
        %787 = vmatprep.subr.mxu0 0.0
        %788 = vmatpush2.msra.mxu0 0.0
        %789 = vmatprep.subr.mxu0 0.0
        %790 = vmatpush2.msra.mxu0 0.0
        %791 = vmatprep.subr.mxu0 0.0
        %792 = vmatpush2.msra.mxu0 0.0
        %793 = vmatprep.mubr.f32.mxu0 0.0
        %794 = vmatmul.mubr.f32.gmra.mxu0 %v727
        %v795 = vpop.f32.mrf.mxu0
        %v796 = vadd.f32 %v305, %v795
        %v797 = vpop.f32.mrf.mxu0
        %798 = vdwg.mxu0
        %s799 = scalar_lea.vmem [#allocation2], 40
        %800 = vst [vmem:[%s799] sm:$0xff] %v796
        %v801 = vld [vmem:[%s286] sm:$0xff]
        %802 = vset.pattern.permute.xlu0 6
        %803 = vperm.xlu0 %802, %v801
        %v804 = vpop.permute.xlu0 %803
        %vm805 = vcmp.eq.s32.totalorder %v308, %v804
        %v806 = vsel %vm805, 1, 0
        %v807 = vcvt.s32.f32 %v806
        %v809 = vsel %vm316, %v807, 0
        %811 = vmatprep.subr.mxu0 0.0
        %812 = vmatpush1.msra.mxu0 0.0
        %813 = vmatprep.subr.mxu0 0.0
        %814 = vmatpush1.msra.mxu0 0.0
        %815 = vmatprep.subr.mxu0 0.0
        %816 = vmatpush1.msra.mxu0 0.0
        %817 = vmatprep.subr.mxu0 0.0
        %818 = vmatpush1.msra.mxu0 0.0
        %819 = vmatprep.subr.mxu0 0.0
        %820 = vmatpush1.msra.mxu0 0.0
        %821 = vmatprep.subr.mxu0 0.0
        %822 = vmatpush1.msra.mxu0 0.0
        %823 = vmatprep.subr.mxu0 0.0
        %824 = vmatpush1.msra.mxu0 0.0
        %825 = vmatprep.subr.mxu0 0.0
        %826 = vmatpush1.msra.mxu0 0.0
        %827 = vmatprep.subr.mxu0 0.0
        %828 = vmatpush1.msra.mxu0 0.0
        %829 = vmatprep.subr.mxu0 0.0
        %830 = vmatpush1.msra.mxu0 0.0
        %831 = vmatprep.subr.mxu0 0.0
        %832 = vmatpush1.msra.mxu0 0.0
        %833 = vmatprep.subr.mxu0 0.0
        %834 = vmatpush1.msra.mxu0 0.0
        %835 = vmatprep.subr.mxu0 0.0
        %836 = vmatpush1.msra.mxu0 %v294
        %837 = vmatprep.subr.mxu0 0.0
        %838 = vmatpush1.msra.mxu0 %v293
        %839 = vmatprep.subr.mxu0 0.0
        %840 = vmatpush1.msra.mxu0 %v292
        %841 = vmatprep.subr.mxu0 0.0
        %842 = vmatpush1.msra.mxu0 %v291
        %843 = vmatprep.subr.mxu0 0.0
        %844 = vmatpush2.msra.mxu0 0.0
        %845 = vmatprep.subr.mxu0 0.0
        %846 = vmatpush2.msra.mxu0 0.0
        %847 = vmatprep.subr.mxu0 0.0
        %848 = vmatpush2.msra.mxu0 0.0
        %849 = vmatprep.subr.mxu0 0.0
        %850 = vmatpush2.msra.mxu0 0.0
        %851 = vmatprep.subr.mxu0 0.0
        %852 = vmatpush2.msra.mxu0 0.0
        %853 = vmatprep.subr.mxu0 0.0
        %854 = vmatpush2.msra.mxu0 0.0
        %855 = vmatprep.subr.mxu0 0.0
        %856 = vmatpush2.msra.mxu0 0.0
        %857 = vmatprep.subr.mxu0 0.0
        %858 = vmatpush2.msra.mxu0 0.0
        %859 = vmatprep.subr.mxu0 0.0
        %860 = vmatpush2.msra.mxu0 0.0
        %861 = vmatprep.subr.mxu0 0.0
        %862 = vmatpush2.msra.mxu0 0.0
        %863 = vmatprep.subr.mxu0 0.0
        %864 = vmatpush2.msra.mxu0 0.0
        %865 = vmatprep.subr.mxu0 0.0
        %866 = vmatpush2.msra.mxu0 0.0
        %867 = vmatprep.subr.mxu0 0.0
        %868 = vmatpush2.msra.mxu0 0.0
        %869 = vmatprep.subr.mxu0 0.0
        %870 = vmatpush2.msra.mxu0 0.0
        %871 = vmatprep.subr.mxu0 0.0
        %872 = vmatpush2.msra.mxu0 0.0
        %873 = vmatprep.subr.mxu0 0.0
        %874 = vmatpush2.msra.mxu0 0.0
        %875 = vmatprep.mubr.f32.mxu0 0.0
        %876 = vmatmul.mubr.f32.gmra.mxu0 %v809
        %v877 = vpop.f32.mrf.mxu0
        %v878 = vadd.f32 %v305, %v877
        %v879 = vpop.f32.mrf.mxu0
        %880 = vdwg.mxu0
        %s881 = scalar_lea.vmem [#allocation2], 48
        %882 = vst [vmem:[%s881] sm:$0xff] %v878
        %v883 = vld [vmem:[%s286] sm:$0xff]
        %884 = vset.pattern.permute.xlu0 7
        %885 = vperm.xlu0 %884, %v883
        %v886 = vpop.permute.xlu0 %885
        %vm887 = vcmp.eq.s32.totalorder %v308, %v886
        %v888 = vsel %vm887, 1, 0
        %v889 = vcvt.s32.f32 %v888
        %v891 = vsel %vm316, %v889, 0
        %893 = vmatprep.subr.mxu0 0.0
        %894 = vmatpush1.msra.mxu0 0.0
        %895 = vmatprep.subr.mxu0 0.0
        %896 = vmatpush1.msra.mxu0 0.0
        %897 = vmatprep.subr.mxu0 0.0
        %898 = vmatpush1.msra.mxu0 0.0
        %899 = vmatprep.subr.mxu0 0.0
        %900 = vmatpush1.msra.mxu0 0.0
        %901 = vmatprep.subr.mxu0 0.0
        %902 = vmatpush1.msra.mxu0 0.0
        %903 = vmatprep.subr.mxu0 0.0
        %904 = vmatpush1.msra.mxu0 0.0
        %905 = vmatprep.subr.mxu0 0.0
        %906 = vmatpush1.msra.mxu0 0.0
        %907 = vmatprep.subr.mxu0 0.0
        %908 = vmatpush1.msra.mxu0 0.0
        %909 = vmatprep.subr.mxu0 0.0
        %910 = vmatpush1.msra.mxu0 0.0
        %911 = vmatprep.subr.mxu0 0.0
        %912 = vmatpush1.msra.mxu0 0.0
        %913 = vmatprep.subr.mxu0 0.0
        %914 = vmatpush1.msra.mxu0 0.0
        %915 = vmatprep.subr.mxu0 0.0
        %916 = vmatpush1.msra.mxu0 0.0
        %917 = vmatprep.subr.mxu0 0.0
        %918 = vmatpush1.msra.mxu0 %v294
        %919 = vmatprep.subr.mxu0 0.0
        %920 = vmatpush1.msra.mxu0 %v293
        %921 = vmatprep.subr.mxu0 0.0
        %922 = vmatpush1.msra.mxu0 %v292
        %923 = vmatprep.subr.mxu0 0.0
        %924 = vmatpush1.msra.mxu0 %v291
        %925 = vmatprep.subr.mxu0 0.0
        %926 = vmatpush2.msra.mxu0 0.0
        %927 = vmatprep.subr.mxu0 0.0
        %928 = vmatpush2.msra.mxu0 0.0
        %929 = vmatprep.subr.mxu0 0.0
        %930 = vmatpush2.msra.mxu0 0.0
        %931 = vmatprep.subr.mxu0 0.0
        %932 = vmatpush2.msra.mxu0 0.0
        %933 = vmatprep.subr.mxu0 0.0
        %934 = vmatpush2.msra.mxu0 0.0
        %935 = vmatprep.subr.mxu0 0.0
        %936 = vmatpush2.msra.mxu0 0.0
        %937 = vmatprep.subr.mxu0 0.0
        %938 = vmatpush2.msra.mxu0 0.0
        %939 = vmatprep.subr.mxu0 0.0
        %940 = vmatpush2.msra.mxu0 0.0
        %941 = vmatprep.subr.mxu0 0.0
        %942 = vmatpush2.msra.mxu0 0.0
        %943 = vmatprep.subr.mxu0 0.0
        %944 = vmatpush2.msra.mxu0 0.0
        %945 = vmatprep.subr.mxu0 0.0
        %946 = vmatpush2.msra.mxu0 0.0
        %947 = vmatprep.subr.mxu0 0.0
        %948 = vmatpush2.msra.mxu0 0.0
        %949 = vmatprep.subr.mxu0 0.0
        %950 = vmatpush2.msra.mxu0 0.0
        %951 = vmatprep.subr.mxu0 0.0
        %952 = vmatpush2.msra.mxu0 0.0
        %953 = vmatprep.subr.mxu0 0.0
        %954 = vmatpush2.msra.mxu0 0.0
        %955 = vmatprep.subr.mxu0 0.0
        %956 = vmatpush2.msra.mxu0 0.0
        %957 = vmatprep.mubr.f32.mxu0 0.0
        %958 = vmatmul.mubr.f32.gmra.mxu0 %v891
        %v959 = vpop.f32.mrf.mxu0
        %v960 = vadd.f32 %v305, %v959
        %v961 = vpop.f32.mrf.mxu0
        %962 = vdwg.mxu0
        %s963 = scalar_lea.vmem [#allocation2], 56
        %964 = vst [vmem:[%s963] sm:$0xff] %v960
        loop: start=0, step=1, limit=8
        $region49: #{tpu_custom_call.1} parent=47 // loop_pre_header
          _
        $region50: #{tpu_custom_call.1} parent=47 // loop_header
          %s966 = sphi 0, %s970
          %p967 = scmp.ge.s32.totalorder %s966, 8
          %v971 = vphi 0.0, %v1076
          %v972 = vphi 0.0, %v1070
          %v973 = vphi -inf, %v1085
        $region51: #{tpu_custom_call.1} parent=47 // loop_header_branch
          %969 = sbr.rel (%p967) target = $region55
        $region52: #{tpu_custom_call.1} parent=47 // loop_body
          %s974 = smul.u32 %s966, 8
          %s975 = scalar_lea.vmem [#allocation2], %s974
          %v976 = vld [vmem:[%s975] sm:$0xff]
          %978 = vrot.lane.b32.xlu0 %v971, 32
          %v979 = vpop.permute.xlu0 %978
          %v980 = vsel %vm316, %v979, 0
          %982 = vmatprep.subr.mxu0 0.0
          %983 = vmatpush1.msra.mxu0 0.0
          %984 = vmatprep.subr.mxu0 0.0
          %985 = vmatpush1.msra.mxu0 0.0
          %986 = vmatprep.subr.mxu0 0.0
          %987 = vmatpush1.msra.mxu0 0.0
          %988 = vmatprep.subr.mxu0 0.0
          %989 = vmatpush1.msra.mxu0 0.0
          %990 = vmatprep.subr.mxu0 0.0
          %991 = vmatpush1.msra.mxu0 0.0
          %992 = vmatprep.subr.mxu0 0.0
          %993 = vmatpush1.msra.mxu0 0.0
          %994 = vmatprep.subr.mxu0 0.0
          %995 = vmatpush1.msra.mxu0 0.0
          %996 = vmatprep.subr.mxu0 0.0
          %997 = vmatpush1.msra.mxu0 0.0
          %998 = vmatprep.subr.mxu0 0.0
          %999 = vmatpush1.msra.mxu0 0.0
          %1000 = vmatprep.subr.mxu0 0.0
          %1001 = vmatpush1.msra.mxu0 0.0
          %1002 = vmatprep.subr.mxu0 0.0
          %1003 = vmatpush1.msra.mxu0 0.0
          %1004 = vmatprep.subr.mxu0 0.0
          %1005 = vmatpush1.msra.mxu0 0.0
          %1006 = vmatprep.subr.mxu0 0.0
          %1007 = vmatpush1.msra.mxu0 %v298
          %1008 = vmatprep.subr.mxu0 0.0
          %1009 = vmatpush1.msra.mxu0 %v297
          %1010 = vmatprep.subr.mxu0 0.0
          %1011 = vmatpush1.msra.mxu0 %v296
          %1012 = vmatprep.subr.mxu0 0.0
          %1013 = vmatpush1.msra.mxu0 %v295
          %1014 = vmatprep.subr.mxu0 0.0
          %1015 = vmatpush2.msra.mxu0 0.0
          %1016 = vmatprep.subr.mxu0 0.0
          %1017 = vmatpush2.msra.mxu0 0.0
          %1018 = vmatprep.subr.mxu0 0.0
          %1019 = vmatpush2.msra.mxu0 0.0
          %1020 = vmatprep.subr.mxu0 0.0
          %1021 = vmatpush2.msra.mxu0 0.0
          %1022 = vmatprep.subr.mxu0 0.0
          %1023 = vmatpush2.msra.mxu0 0.0
          %1024 = vmatprep.subr.mxu0 0.0
          %1025 = vmatpush2.msra.mxu0 0.0
          %1026 = vmatprep.subr.mxu0 0.0
          %1027 = vmatpush2.msra.mxu0 0.0
          %1028 = vmatprep.subr.mxu0 0.0
          %1029 = vmatpush2.msra.mxu0 0.0
          %1030 = vmatprep.subr.mxu0 0.0
          %1031 = vmatpush2.msra.mxu0 0.0
          %1032 = vmatprep.subr.mxu0 0.0
          %1033 = vmatpush2.msra.mxu0 0.0
          %1034 = vmatprep.subr.mxu0 0.0
          %1035 = vmatpush2.msra.mxu0 0.0
          %1036 = vmatprep.subr.mxu0 0.0
          %1037 = vmatpush2.msra.mxu0 0.0
          %1038 = vmatprep.subr.mxu0 0.0
          %1039 = vmatpush2.msra.mxu0 0.0
          %1040 = vmatprep.subr.mxu0 0.0
          %1041 = vmatpush2.msra.mxu0 0.0
          %1042 = vmatprep.subr.mxu0 0.0
          %1043 = vmatpush2.msra.mxu0 0.0
          %1044 = vmatprep.subr.mxu0 0.0
          %1045 = vmatpush2.msra.mxu0 0.0
          %1046 = vmatprep.mubr.f32.mxu0 0.0
          %1047 = vmatmul.mubr.f32.gmra.mxu0 %v980
          %v1048 = vpop.f32.mrf.mxu0
          %v1049 = vadd.f32 0.0, %v1048
          %v1050 = vpop.f32.mrf.mxu0
          %1051 = vdwg.mxu0
          %v1052 = vadd.f32 %v976, %v1049
          %v1053 = vxor.u32 %v1052, 2147483648
          %v1054 = vmul.f32 %v1053, 1.442695
          %v1055 = vpow.pop %v1054
          %v1056 = vadd.f32 %v1055, 1.0
          %v1057 = vrcp.pop %v1056
          %v1058 = vmul.f32 1.0, %v1057
          %v1059 = vtanh.pop %v1052
          %v1060 = vmul.f32 %v1058, %v972
          %1062 = vrot.lane.b32.xlu0 %v1059, 64
          %v1063 = vpop.permute.xlu0 %1062
          %v1065 = vmul.f32 %v1058, %v1063
          %1067 = vrot.lane.b32.xlu0 %v1065, 32
          %v1068 = vpop.permute.xlu0 %1067
          %v1070 = vadd.f32 %v1060, %v1068
          %v1071 = vtanh.pop %v1070
          %1073 = vrot.lane.b32.xlu0 %v1071, 64
          %v1074 = vpop.permute.xlu0 %1073
          %v1076 = vmul.f32 %v1058, %v1074
          %v1077 = vstv %s966
          %vm1078 = vcmp.gt.s32.totalorder %v299, %v1077
          %v1079 = vsel %vm1078, 1, 0
          %1080 = vset.pattern.permute.xlu0 0
          %1081 = vperm.xlu0 %1080, %v1079
          %v1082 = vpop.permute.xlu0 %1081
          %vm1083 = vcmp.eq.s32.totalorder %v1082, 1
          %v1084 = vsel %vm1083, %v1076, 0.0
          %v1085 = vmax.f32 %v973, %v1084
        $region53: #{tpu_custom_call.1} parent=47 // loop_footer
          %s970 = sadd.s32 1, %s966
        $region54: #{tpu_custom_call.1} parent=47 // loop_footer_branch
          %965 = sbr.rel target = $region50
        $region55: #{tpu_custom_call.1} parent=47 // loop_exit
          _
        %v1086 = vtanh.pop %v973
        %v1087 = vtanh.pop %v1086
        %v1088 = vld [vmem:[%s5] sm:$0xff]
        %v1089 = vld [vmem:[%s5 + $0x8] sm:$0xff]
        %v1090 = vld [vmem:[%s5 + $0x10] sm:$0xff]
        %v1091 = vld [vmem:[%s5 + $0x18] sm:$0xff]
        %v1092 = vld [vmem:[%s6] sm:$0x1]
        %v1094 = vlaneseq
        %v1095 = vshrl.u32 %v1094, 7
        %v1096 = vsub.s32 0, %v1095
        %v1097 = vrot.slane %v1092, %v1096
        %1100 = vrot.lane.b32.xlu0 %v1087, 32
        %v1101 = vpop.permute.xlu0 %1100
        %v1102 = vsel %vm316, %v1101, 0
        %1104 = vmatprep.subr.mxu0 0.0
        %1105 = vmatpush1.msra.mxu0 0.0
        %1106 = vmatprep.subr.mxu0 0.0
        %1107 = vmatpush1.msra.mxu0 0.0
        %1108 = vmatprep.subr.mxu0 0.0
        %1109 = vmatpush1.msra.mxu0 0.0
        %1110 = vmatprep.subr.mxu0 0.0
        %1111 = vmatpush1.msra.mxu0 0.0
        %1112 = vmatprep.subr.mxu0 0.0
        %1113 = vmatpush1.msra.mxu0 0.0
        %1114 = vmatprep.subr.mxu0 0.0
        %1115 = vmatpush1.msra.mxu0 0.0
        %1116 = vmatprep.subr.mxu0 0.0
        %1117 = vmatpush1.msra.mxu0 0.0
        %1118 = vmatprep.subr.mxu0 0.0
        %1119 = vmatpush1.msra.mxu0 0.0
        %1120 = vmatprep.subr.mxu0 0.0
        %1121 = vmatpush1.msra.mxu0 0.0
        %1122 = vmatprep.subr.mxu0 0.0
        %1123 = vmatpush1.msra.mxu0 0.0
        %1124 = vmatprep.subr.mxu0 0.0
        %1125 = vmatpush1.msra.mxu0 0.0
        %1126 = vmatprep.subr.mxu0 0.0
        %1127 = vmatpush1.msra.mxu0 0.0
        %1128 = vmatprep.subr.mxu0 0.0
        %1129 = vmatpush1.msra.mxu0 %v1091
        %1130 = vmatprep.subr.mxu0 0.0
        %1131 = vmatpush1.msra.mxu0 %v1090
        %1132 = vmatprep.subr.mxu0 0.0
        %1133 = vmatpush1.msra.mxu0 %v1089
        %1134 = vmatprep.subr.mxu0 0.0
        %1135 = vmatpush1.msra.mxu0 %v1088
        %1136 = vmatprep.subr.mxu0 0.0
        %1137 = vmatpush2.msra.mxu0 0.0
        %1138 = vmatprep.subr.mxu0 0.0
        %1139 = vmatpush2.msra.mxu0 0.0
        %1140 = vmatprep.subr.mxu0 0.0
        %1141 = vmatpush2.msra.mxu0 0.0
        %1142 = vmatprep.subr.mxu0 0.0
        %1143 = vmatpush2.msra.mxu0 0.0
        %1144 = vmatprep.subr.mxu0 0.0
        %1145 = vmatpush2.msra.mxu0 0.0
        %1146 = vmatprep.subr.mxu0 0.0
        %1147 = vmatpush2.msra.mxu0 0.0
        %1148 = vmatprep.subr.mxu0 0.0
        %1149 = vmatpush2.msra.mxu0 0.0
        %1150 = vmatprep.subr.mxu0 0.0
        %1151 = vmatpush2.msra.mxu0 0.0
        %1152 = vmatprep.subr.mxu0 0.0
        %1153 = vmatpush2.msra.mxu0 0.0
        %1154 = vmatprep.subr.mxu0 0.0
        %1155 = vmatpush2.msra.mxu0 0.0
        %1156 = vmatprep.subr.mxu0 0.0
        %1157 = vmatpush2.msra.mxu0 0.0
        %1158 = vmatprep.subr.mxu0 0.0
        %1159 = vmatpush2.msra.mxu0 0.0
        %1160 = vmatprep.subr.mxu0 0.0
        %1161 = vmatpush2.msra.mxu0 0.0
        %1162 = vmatprep.subr.mxu0 0.0
        %1163 = vmatpush2.msra.mxu0 0.0
        %1164 = vmatprep.subr.mxu0 0.0
        %1165 = vmatpush2.msra.mxu0 0.0
        %1166 = vmatprep.subr.mxu0 0.0
        %1167 = vmatpush2.msra.mxu0 0.0
        %1168 = vmatprep.mubr.f32.mxu0 0.0
        %1169 = vmatmul.mubr.f32.gmra.mxu0 %v1102
        %v1170 = vpop.f32.mrf.mxu0
        %v1171 = vadd.f32 %v1097, %v1170
        %v1172 = vpop.f32.mrf.mxu0
        %1173 = vdwg.mxu0
        %vm1174 = vcmask 130048
        %v1175 = vsel %vm1174, %v1171, -inf
        %1176 = vmax.xlane.f32.xlu0 %v1175
        %v1177 = vpop.xlane.xlu0 %1176
        %v1178 = vsub.f32 %v1171, %v1177
        %v1179 = vmul.f32 %v1178, 1.442695
        %v1180 = vpow.pop %v1179
        %v1181 = vsel %vm1174, %v1180, 0.0
        %1182 = vadd.xlane.f32.xlu0 %v1181
        %v1183 = vpop.xlane.xlu0 %1182
        %v1184 = vlog2.pop %v1183
        %v1185 = vmul.f32 %v1184, 0.6931472
        %v1186 = vsub.f32 %v1178, %v1185
        %1187 = vst.msk [vmem:[%s282] sm:$0xff] %vm1174, %v1186
        %s1188 = sand.u32 %s186, 1
        %s1189 = scalar_lea.sflag [#allocation4], %s1188
        %s1190 = sand.u32 %s186, 1
        %s1191 = smul.addr %s1190, 8
        %s1192 = scalar_lea.vmem [#allocation3], %s1191
        // Predicated region
        $region56: #{tpu_custom_call.1} parent=47 // pred_check
          %p1193 = pneg %p196
        $region57: #{tpu_custom_call.1} parent=47 // pred_check_branch
          %1195 = sbr.rel (%p1193) target = $region59
        $region58: #{tpu_custom_call.1} parent=47 // pred_region
          %s1197 = ssub.s32 128, 128
          %1198 = vsyncadd %s1189, %s1197
          %s1199 = smul.addr %s21, 128
          %s1200 = scalar_lea.hbm %s7, %s1199
          %s1202 = sshll.u32 %s1192, 4
          %s1203 = int_to_ptr.vmem [resolvable:$true] %s1202
          %1205 = dma.vmem_to_hbm [thread:$0]  %s1203, 128, %s1200, %s1189
        $region59: #{tpu_custom_call.1} parent=47 // pred_fallthru
          _
      $region48: #{tpu_custom_call.1} parent=5 // pred_fallthru
        _
      %p1206 = scmp.le.s32.totalorder 2, %s16
      // Predicated region
      $region60: #{tpu_custom_call.1} parent=5 // pred_check
        %p1207 = pneg %p1206
      $region61: #{tpu_custom_call.1} parent=5 // pred_check_branch
        %1209 = sbr.rel (%p1207) target = $region63
      $region62: #{tpu_custom_call.1} parent=5 // pred_region
        %s1210 = ssub.s32 %s16, 2
        // Predicated region
        $region64: #{tpu_custom_call.1} parent=62 // pred_check
          %p1211 = pneg %p202
        $region65: #{tpu_custom_call.1} parent=62 // pred_check_branch
          %1213 = sbr.rel (%p1211) target = $region67
        $region66: #{tpu_custom_call.1} parent=62 // pred_region
          %s1214 = sand.u32 %s187, 1
          %s1215 = scalar_lea.sflag [#allocation4], %s1214
          %s1216 = sand.u32 %s187, 1
          %s1217 = smul.addr %s1216, 8
          %s1218 = scalar_lea.vmem [#allocation3], %s1217
          %1219 = dma.done %s1215, 128
        $region67: #{tpu_custom_call.1} parent=62 // pred_fallthru
          _
      $region63: #{tpu_custom_call.1} parent=5 // pred_fallthru
        _
    $region6: #{tpu_custom_call.1} parent=1 // loop_footer
      %s20 = sadd.s32 1, %s16
    $region7: #{tpu_custom_call.1} parent=1 // loop_footer_branch
      %15 = sbr.rel target = $region3
    $region8: #{tpu_custom_call.1} parent=1 // loop_exit
      _
    %1220 = vsyncpa [#allocation4], 1
    %s1221 = scalar_lea.sflag [#allocation4], 1
    %1222 = vsyncpa %s1221, 1

</llo_original>
